<compile_context>
chip_gen: v7x
topology: tpu7x:2x2x1
jax: 0.10.0
libtpu: 0.0.40
codegen_flags: <defaults>
</compile_context>

<pallas_src>
import functools
import math

import jax
import jax.numpy as jnp
from jax.experimental import pallas as pl
from jax.experimental.pallas import tpu as pltpu


# ----------------------------- in-kernel helpers -----------------------------

def _layernorm(x, g, b, eps=1e-5):
    mean = jnp.mean(x, axis=-1, keepdims=True)
    var = jnp.mean((x - mean) ** 2, axis=-1, keepdims=True)
    return (x - mean) * jax.lax.rsqrt(var + eps) * g + b


def _gelu_exact(x):
    # nn.GELU() default = exact erf formulation (kept for parity with PyTorch).
    return 0.5 * x * (1.0 + jax.lax.erf(x * (1.0 / math.sqrt(2.0))))


# ----------------------------- fused encoder-stack kernel --------------------

def encoder_stack_kernel(x_ref, bias_ref,
                         g1_ref, be1_ref,
                         wqkv_ref, wo_ref,
                         w1_ref, b1_ref, w2_ref, b2_ref,
                         gf_ref, bf_ref,
                         o_ref,
                         qkv_s, ctx_s, *, heads):
    layer = pl.program_id(1)
    n_layers = pl.num_programs(1)

    bt, S, D = o_ref.shape
    M = bt * S
    hd = D // heads

    # Load this batch tile's activations into the resident output block (which
    # is also the layer-to-layer f32 carry) on the first layer step.
    @pl.when(layer == 0)
    def _():
        o_ref[...] = x_ref[...].astype(o_ref.dtype)

    x2d = o_ref[...].astype(jnp.float32).reshape(M, D)        # residual stream

    # ---- pre-norm (f32 VPU math) ----
    norm = _layernorm(x2d, g1_ref[0].astype(jnp.float32),
                      be1_ref[0].astype(jnp.float32))

    # ---- fused QKV projection: ONE lane-dense (M, D) @ (D, 3D) MXU matmul ----
    # (1/sqrt(head_dim) is already folded into the Q columns of the weight.)
    qkv_s[...] = jnp.dot(norm.astype(jnp.bfloat16), wqkv_ref[0],
                         preferred_element_type=jnp.float32)

    bias = bias_ref[...].astype(jnp.float32)                   # (bt, S, S)

    # ---- attention core: static unrolled loop over heads ----
    # Per-head q/k/v are narrow ref-level slices of the fused-QKV scratch, so
    # activations are never replicated H times and the additive mask adds with
    # no broadcast copy.  TODO(synk): flash-tile over KV for large S.
    for h in range(heads):
        qh = qkv_s[:, h * hd:(h + 1) * hd].reshape(bt, S, hd).astype(jnp.bfloat16)
        kh = qkv_s[:, D + h * hd:D + (h + 1) * hd].reshape(bt, S, hd).astype(jnp.bfloat16)
        vh = qkv_s[:, 2 * D + h * hd:2 * D + (h + 1) * hd].reshape(bt, S, hd).astype(jnp.bfloat16)

        att = jnp.einsum('bqd,bkd->bqk', qh, kh,
                         preferred_element_type=jnp.float32) + bias
        # softmax in f32 (EUP exp + approx reciprocal)
        att = att - jnp.max(att, axis=-1, keepdims=True)
        e = jnp.exp(att)
        p = e * pl.reciprocal(jnp.sum(e, axis=-1, keepdims=True), approx=True)
        # TODO(synk): attention dropout (p=0.1) is identity (eval mode).
        ctx = jnp.einsum('bqk,bkd->bqd', p.astype(jnp.bfloat16), vh,
                         preferred_element_type=jnp.float32)   # (bt, S, hd)
        ctx_s[:, h * hd:(h + 1) * hd] = ctx.reshape(M, hd)

    # ---- output projection: ONE (M, D) @ (D, D) matmul (K = D) ----
    attn = jnp.dot(ctx_s[...].astype(jnp.bfloat16), wo_ref[0],
                   preferred_element_type=jnp.float32)
    x2d = x2d + attn                                            # residual 1
    # TODO(synk): dropout1 (p=0.3) is identity (eval mode).

    # ---- feed-forward on the *raw* residual x (matches the torch module;
    #      layer_norm2 / layer_norm3 are dead parameters) ----
    h1 = jnp.dot(x2d.astype(jnp.bfloat16), w1_ref[0],
                 preferred_element_type=jnp.float32) + b1_ref[0].astype(jnp.float32)
    h1 = _gelu_exact(h1)
    # TODO(synk): FFN dropout (p=0.3) is identity (eval mode).
    ff = jnp.dot(h1.astype(jnp.bfloat16), w2_ref[0],
                 preferred_element_type=jnp.float32) + b2_ref[0].astype(jnp.float32)
    x2d = x2d + ff                                              # residual 2
    # TODO(synk): dropout2 (p=0.3) is identity (eval mode).

    # Exactly one activation-slab store per layer: o_ref is the resident carry
    # (constant block index along the layer axis -> single HBM writeback).
    @pl.when(layer < n_layers - 1)
    def _():
        o_ref[...] = x2d.reshape(bt, S, D).astype(o_ref.dtype)

    # ---- final LayerNorm folded into the last layer step ----
    @pl.when(layer == n_layers - 1)
    def _():
        y = _layernorm(x2d, gf_ref[...].astype(jnp.float32),
                       bf_ref[...].astype(jnp.float32))
        o_ref[...] = y.reshape(bt, S, D).astype(o_ref.dtype)


# ----------------------------- wrapper ---------------------------------------

def encoder_forward(x, src_mask, params, heads, *, batch_tiles=1):
    B, S, D = x.shape
    L = params["wqkv"].shape[0]
    d_ff = params["w1"].shape[2]
    assert B % batch_tiles == 0
    bt = B // batch_tiles

    # src_mask [B,1,S,S] -> compact additive bias [B,S,S] f32 (mask==0 -> -1e9);
    # the compare is hoisted out of the kernel.
    bias = jnp.where(src_mask[:, 0, :, :] == 0, -1e9, 0.0).astype(jnp.float32)

    def layer_spec(shape):
        nd = len(shape)
        return pl.BlockSpec((1,) + tuple(shape[1:]),
                            lambda b, l, nd=nd: (l,) + (0,) * (nd - 1))

    def batch_spec(shape):
        nd = len(shape)
        return pl.BlockSpec((bt,) + tuple(shape[1:]),
                            lambda b, l, nd=nd: (b,) + (0,) * (nd - 1))

    def const_spec(shape):
        nd = len(shape)
        return pl.BlockSpec(tuple(shape), lambda b, l, nd=nd: (0,) * nd)

    kernel = functools.partial(encoder_stack_kernel, heads=heads)

    return pl.pallas_call(
        kernel,
        out_shape=jax.ShapeDtypeStruct((B, S, D), x.dtype),
        grid=(batch_tiles, L),
        in_specs=[
            batch_spec((B, S, D)),            # x (resident per batch tile)
            batch_spec((B, S, S)),            # additive mask bias
            layer_spec((L, 1, D)),            # LN1 gamma
            layer_spec((L, 1, D)),            # LN1 beta
            layer_spec((L, D, 3 * D)),        # fused QKV weight (scale folded into Q)
            layer_spec((L, D, D)),            # output projection weight
            layer_spec((L, D, d_ff)),         # fc1 weight
            layer_spec((L, 1, d_ff)),         # fc1 bias
            layer_spec((L, d_ff, D)),         # fc2 weight
            layer_spec((L, 1, D)),            # fc2 bias
            const_spec((1, D)),               # final norm gamma
            const_spec((1, D)),               # final norm beta
        ],
        out_specs=batch_spec((B, S, D)),      # resident carry + final output
        scratch_shapes=[
            pltpu.VMEM((bt * S, 3 * D), jnp.float32),   # fused QKV activations
            pltpu.VMEM((bt * S, D), jnp.float32),       # assembled per-head context
        ],
        compiler_params=pltpu.CompilerParams(
            # batch axis parallel (2nd TensorCore on v7x when batch_tiles > 1),
            # layer axis is a sequential carry.
            dimension_semantics=("parallel", "arbitrary"),
            # Modest scoped-VMEM budget: safe on 64-MiB v7x; raise toward
            # 64-96 MiB on 128-MiB v5e/v6e for large d_model/d_ff so layer-
            # weight double-buffering is preserved.
            vmem_limit_bytes=32 * 1024 * 1024),
    )(x, bias, params["g1"], params["be1"],
      params["wqkv"], params["wo"],
      params["w1"], params["b1"], params["w2"], params["b2"],
      params["norm_g"], params["norm_b"])


# ----------------------------- parameter init --------------------------------

def init_params(key, num_blocks, d_model, heads, d_ff):
    hd = d_model // heads
    s_d = 1.0 / math.sqrt(d_model)
    s_f = 1.0 / math.sqrt(d_ff)
    scale = 1.0 / math.sqrt(hd)

    wqkv_l, wo_l, w1_l, w2_l = [], [], [], []
    for i in range(num_blocks):
        k = jax.random.fold_in(key, i)
        ks = jax.random.split(k, 6)
        wq = jax.random.uniform(ks[0], (d_model, d_model), jnp.float32, -s_d, s_d)
        wk = jax.random.uniform(ks[1], (d_model, d_model), jnp.float32, -s_d, s_d)
        wv = jax.random.uniform(ks[2], (d_model, d_model), jnp.float32, -s_d, s_d)
        wo = jax.random.uniform(ks[3], (d_model, d_model), jnp.float32, -s_d, s_d)
        w1 = jax.random.uniform(ks[4], (d_model, d_ff), jnp.float32, -s_d, s_d)
        w2 = jax.random.uniform(ks[5], (d_ff, d_model), jnp.float32, -s_f, s_f)
        # Fold the 1/sqrt(head_dim) attention scale into the Q columns (free).
        wqkv_l.append(jnp.concatenate([wq * scale, wk, wv], axis=1))
        wo_l.append(wo)
        w1_l.append(w1)
        w2_l.append(w2)

    return dict(
        # MXU operands stored as bf16 (native MXU format, half the VMEM/DMA).
        wqkv=jnp.stack(wqkv_l).astype(jnp.bfloat16),   # (L, D, 3D)
        wo=jnp.stack(wo_l).astype(jnp.bfloat16),       # (L, D, D)
        w1=jnp.stack(w1_l).astype(jnp.bfloat16),       # (L, D, d_ff)
        w2=jnp.stack(w2_l).astype(jnp.bfloat16),       # (L, d_ff, D)
        # LN params / biases stay f32 (VPU path).
        g1=jnp.ones((num_blocks, 1, d_model), jnp.float32),
        be1=jnp.zeros((num_blocks, 1, d_model), jnp.float32),
        b1=jnp.zeros((num_blocks, 1, d_ff), jnp.float32),
        b2=jnp.zeros((num_blocks, 1, d_model), jnp.float32),
        norm_g=jnp.ones((1, d_model), jnp.float32),
        norm_b=jnp.zeros((1, d_model), jnp.float32),
    )


# ----------------------------- main ------------------------------------------

if __name__ == "__main__":
    B, S, D, H, D_FF, NUM_BLOCKS = 2, 8, 32, 4, 64, 2

    key = jax.random.PRNGKey(0)
    kx, kp = jax.random.split(key)
    x = jax.random.normal(kx, (B, S, D), jnp.float32)

    # src_mask: keep all positions for batch 0, mask the last 2 keys for
    # batch 1 (1 = attend, 0 = masked), PyTorch broadcast convention [B,1,S,S].
    mask = jnp.ones((B, 1, S, S), jnp.float32)
    mask = mask.at[1, :, :, S - 2:].set(0.0)

    params = init_params(kp, NUM_BLOCKS, D, H, D_FF)

    # batch_tiles=1: whole batch resident, weights streamed once per layer
    # (right for single-TC v5e/v6e).  Set batch_tiles=B on v7x to shard the
    # parallel batch axis across its two TensorCores.
    out = encoder_forward(x, mask, params, heads=H, batch_tiles=1)
    out = jax.block_until_ready(out)
    assert out.shape == (B, S, D) and out.dtype == jnp.float32
    assert bool(jnp.all(jnp.isfinite(out)))
    print("KERNEL_OK")
</pallas_src>

<mosaic_0001>
module attributes {stable_mosaic.version = 11 : i64} {
  func.func @encoder_stack_kernel(%arg0: i32, %arg1: i32, %arg2: memref<2x8x32xf32, #tpu.memory_space<vmem>>, %arg3: memref<2x8x8xf32, #tpu.memory_space<vmem>>, %arg4: memref<1x1x32xf32, #tpu.memory_space<vmem>>, %arg5: memref<1x1x32xf32, #tpu.memory_space<vmem>>, %arg6: memref<1x32x96xbf16, #tpu.memory_space<vmem>>, %arg7: memref<1x32x32xbf16, #tpu.memory_space<vmem>>, %arg8: memref<1x32x64xbf16, #tpu.memory_space<vmem>>, %arg9: memref<1x1x64xf32, #tpu.memory_space<vmem>>, %arg10: memref<1x64x32xbf16, #tpu.memory_space<vmem>>, %arg11: memref<1x1x32xf32, #tpu.memory_space<vmem>>, %arg12: memref<1x32xf32, #tpu.memory_space<vmem>>, %arg13: memref<1x32xf32, #tpu.memory_space<vmem>>, %arg14: memref<2x8x32xf32, #tpu.memory_space<vmem>>, %arg15: memref<16x96xf32, #tpu.memory_space<vmem>>, %arg16: memref<16x32xf32, #tpu.memory_space<vmem>>) attributes {dimension_semantics = [#tpu.dimension_semantics<parallel>, #tpu.dimension_semantics<arbitrary>], iteration_bounds = array<i64: 1, 2>, scalar_prefetch = 0 : i64, scratch_operands = 2 : i64, tpu.core_type = #tpu.core_type<tc>, window_params = [{transform_indices = @transform_0, window_bounds = array<i64: 2, 8, 32>}, {transform_indices = @transform_1, window_bounds = array<i64: 2, 8, 8>}, {transform_indices = @transform_2, window_bounds = array<i64: 1, 1, 32>}, {transform_indices = @transform_3, window_bounds = array<i64: 1, 1, 32>}, {transform_indices = @transform_4, window_bounds = array<i64: 1, 32, 96>}, {transform_indices = @transform_5, window_bounds = array<i64: 1, 32, 32>}, {transform_indices = @transform_6, window_bounds = array<i64: 1, 32, 64>}, {transform_indices = @transform_7, window_bounds = array<i64: 1, 1, 64>}, {transform_indices = @transform_8, window_bounds = array<i64: 1, 64, 32>}, {transform_indices = @transform_9, window_bounds = array<i64: 1, 1, 32>}, {pipeline_mode = #tpu.pipeline_mode<synchronous>, transform_indices = @transform_10, window_bounds = array<i64: 1, 32>}, {pipeline_mode = #tpu.pipeline_mode<synchronous>, transform_indices = @transform_11, window_bounds = array<i64: 1, 32>}, {transform_indices = @transform_12, window_bounds = array<i64: 2, 8, 32>}]} {
    %c0_i32 = arith.constant 0 : i32
    %0 = arith.cmpi eq, %arg1, %c0_i32 : i32
    %1 = arith.extui %0 : i1 to i32
    %c0_i32_0 = arith.constant 0 : i32
    %2 = arith.cmpi ne, %1, %c0_i32_0 : i32
    scf.if %2 {
      %c0_85 = arith.constant 0 : index
      %c0_86 = arith.constant 0 : index
      %c0_87 = arith.constant 0 : index
      %174 = vector.load %arg2[%c0_85, %c0_86, %c0_87] : memref<2x8x32xf32, #tpu.memory_space<vmem>>, vector<2x8x32xf32>
      %c0_88 = arith.constant 0 : index
      %c0_89 = arith.constant 0 : index
      %c0_90 = arith.constant 0 : index
      %175 = vector.load %arg14[%c0_88, %c0_89, %c0_90] : memref<2x8x32xf32, #tpu.memory_space<vmem>>, vector<2x8x32xf32>
      tpu.vector_store %arg14[%c0_88, %c0_89, %c0_90], %174 {strides = array<i32>} : memref<2x8x32xf32, #tpu.memory_space<vmem>>, vector<2x8x32xf32>,
    } else {
    }
    %c0 = arith.constant 0 : index
    %c0_1 = arith.constant 0 : index
    %c0_2 = arith.constant 0 : index
    %3 = vector.load %arg14[%c0, %c0_1, %c0_2] : memref<2x8x32xf32, #tpu.memory_space<vmem>>, vector<2x8x32xf32>
    %4 = vector.shape_cast %3 : vector<2x8x32xf32> to vector<16x32xf32>
    %c0_3 = arith.constant 0 : index
    %c0_4 = arith.constant 0 : index
    %c0_5 = arith.constant 0 : index
    %5 = vector.load %arg4[%c0_3, %c0_4, %c0_5] : memref<1x1x32xf32, #tpu.memory_space<vmem>>, vector<1x1x32xf32>
    %6 = vector.shape_cast %5 : vector<1x1x32xf32> to vector<1x32xf32>
    %c0_6 = arith.constant 0 : index
    %c0_7 = arith.constant 0 : index
    %c0_8 = arith.constant 0 : index
    %7 = vector.load %arg5[%c0_6, %c0_7, %c0_8] : memref<1x1x32xf32, #tpu.memory_space<vmem>>, vector<1x1x32xf32>
    %8 = vector.shape_cast %7 : vector<1x1x32xf32> to vector<1x32xf32>
    %cst = arith.constant dense<0.000000e+00> : vector<16xf32>
    %9 = vector.multi_reduction <add>, %4, %cst [1] : vector<16x32xf32> to vector<16xf32>
    %10 = vector.shape_cast %9 : vector<16xf32> to vector<16x1xf32>
    %cst_9 = arith.constant 3.200000e+01 : f32
    %11 = vector.broadcast %cst_9 : f32 to vector<16x1xf32>
    %12 = arith.divf %10, %11 : vector<16x1xf32>
    %13 = vector.broadcast %12 : vector<16x1xf32> to vector<16x32xf32>
    %14 = arith.subf %4, %13 : vector<16x32xf32>
    %15 = arith.mulf %14, %14 : vector<16x32xf32>
    %cst_10 = arith.constant dense<0.000000e+00> : vector<16xf32>
    %16 = vector.multi_reduction <add>, %15, %cst_10 [1] : vector<16x32xf32> to vector<16xf32>
    %17 = vector.shape_cast %16 : vector<16xf32> to vector<16x1xf32>
    %cst_11 = arith.constant 3.200000e+01 : f32
    %18 = vector.broadcast %cst_11 : f32 to vector<16x1xf32>
    %19 = arith.divf %17, %18 : vector<16x1xf32>
    %20 = vector.broadcast %12 : vector<16x1xf32> to vector<16x32xf32>
    %21 = arith.subf %4, %20 : vector<16x32xf32>
    %cst_12 = arith.constant 9.99999974E-6 : f32
    %22 = vector.broadcast %cst_12 : f32 to vector<16x1xf32>
    %23 = arith.addf %19, %22 : vector<16x1xf32>
    %24 = math.rsqrt %23 : vector<16x1xf32>
    %25 = vector.broadcast %24 : vector<16x1xf32> to vector<16x32xf32>
    %26 = arith.mulf %21, %25 : vector<16x32xf32>
    %27 = vector.broadcast %6 : vector<1x32xf32> to vector<16x32xf32>
    %28 = arith.mulf %26, %27 : vector<16x32xf32>
    %29 = vector.broadcast %8 : vector<1x32xf32> to vector<16x32xf32>
    %30 = arith.addf %28, %29 : vector<16x32xf32>
    %31 = arith.truncf %30 : vector<16x32xf32> to vector<16x32xbf16>
    %c0_13 = arith.constant 0 : index
    %c0_14 = arith.constant 0 : index
    %c0_15 = arith.constant 0 : index
    %32 = vector.load %arg6[%c0_13, %c0_14, %c0_15] : memref<1x32x96xbf16, #tpu.memory_space<vmem>>, vector<1x32x96xbf16>
    %33 = vector.shape_cast %32 : vector<1x32x96xbf16> to vector<32x96xbf16>
    %cst_16 = arith.constant dense<0.000000e+00> : vector<16x96xf32>
    %34 = tpu.matmul %31, %33, %cst_16 {dimension_numbers = #tpu.dot_dimension_numbers<[1], [0], [0], [1], [0, 0, 1, 1], [], []>} : vector<16x32xbf16>, vector<32x96xbf16>, vector<16x96xf32> -> vector<16x96xf32>
    %c0_17 = arith.constant 0 : index
    %c0_18 = arith.constant 0 : index
    %35 = vector.load %arg15[%c0_17, %c0_18] : memref<16x96xf32, #tpu.memory_space<vmem>>, vector<16x96xf32>
    tpu.vector_store %arg15[%c0_17, %c0_18], %34 {strides = array<i32>} : memref<16x96xf32, #tpu.memory_space<vmem>>, vector<16x96xf32>,
    %c0_19 = arith.constant 0 : index
    %c0_20 = arith.constant 0 : index
    %c0_21 = arith.constant 0 : index
    %36 = vector.load %arg3[%c0_19, %c0_20, %c0_21] : memref<2x8x8xf32, #tpu.memory_space<vmem>>, vector<2x8x8xf32>
    %c0_22 = arith.constant 0 : index
    %c0_23 = arith.constant 0 : index
    %37 = vector.load %arg15[%c0_22, %c0_23] : memref<16x96xf32, #tpu.memory_space<vmem>>, vector<16x8xf32>
    %38 = vector.shape_cast %37 : vector<16x8xf32> to vector<2x8x8xf32>
    %39 = arith.truncf %38 : vector<2x8x8xf32> to vector<2x8x8xbf16>
    %c0_24 = arith.constant 0 : index
    %c32 = arith.constant 32 : index
    %40 = vector.load %arg15[%c0_24, %c32] : memref<16x96xf32, #tpu.memory_space<vmem>>, vector<16x8xf32>
    %41 = vector.shape_cast %40 : vector<16x8xf32> to vector<2x8x8xf32>
    %42 = arith.truncf %41 : vector<2x8x8xf32> to vector<2x8x8xbf16>
    %c0_25 = arith.constant 0 : index
    %c64 = arith.constant 64 : index
    %43 = vector.load %arg15[%c0_25, %c64] : memref<16x96xf32, #tpu.memory_space<vmem>>, vector<16x8xf32>
    %44 = vector.shape_cast %43 : vector<16x8xf32> to vector<2x8x8xf32>
    %45 = arith.truncf %44 : vector<2x8x8xf32> to vector<2x8x8xbf16>
    "tpu.trace_start"() <{level = 10 : i32, message = "bqd,bkd->bqk"}> : () -> ()
    %cst_26 = arith.constant dense<0.000000e+00> : vector<2x8x8xf32>
    %46 = tpu.matmul %39, %42, %cst_26 {dimension_numbers = #tpu.dot_dimension_numbers<[2], [2], [1], [1], [0, 0, 0, 1, 1, 1], [0], [0]>} : vector<2x8x8xbf16>, vector<2x8x8xbf16>, vector<2x8x8xf32> -> vector<2x8x8xf32>
    "tpu.trace_stop"() : () -> ()
    %47 = arith.addf %46, %36 : vector<2x8x8xf32>
    %cst_27 = arith.constant dense<0xFF800000> : vector<2x8xf32>
    %48 = vector.multi_reduction <maximumf>, %47, %cst_27 [2] : vector<2x8x8xf32> to vector<2x8xf32>
    %49 = vector.shape_cast %48 : vector<2x8xf32> to vector<2x8x1xf32>
    %50 = vector.broadcast %49 : vector<2x8x1xf32> to vector<2x8x8xf32>
    %51 = arith.subf %47, %50 : vector<2x8x8xf32>
    %52 = math.exp %51 : vector<2x8x8xf32>
    %cst_28 = arith.constant dense<0.000000e+00> : vector<2x8xf32>
    %53 = vector.multi_reduction <add>, %52, %cst_28 [2] : vector<2x8x8xf32> to vector<2x8xf32>
    %54 = vector.shape_cast %53 : vector<2x8xf32> to vector<2x8x1xf32>
    %55 = tpu.reciprocal %54 {approx = true} : vector<2x8x1xf32> -> vector<2x8x1xf32>
    %56 = vector.broadcast %55 : vector<2x8x1xf32> to vector<2x8x8xf32>
    %57 = arith.mulf %52, %56 : vector<2x8x8xf32>
    %58 = arith.truncf %57 : vector<2x8x8xf32> to vector<2x8x8xbf16>
    "tpu.trace_start"() <{level = 10 : i32, message = "bqk,bkd->bqd"}> : () -> ()
    %cst_29 = arith.constant dense<0.000000e+00> : vector<2x8x8xf32>
    %59 = tpu.matmul %58, %45, %cst_29 {dimension_numbers = #tpu.dot_dimension_numbers<[2], [1], [1], [2], [0, 0, 0, 1, 1, 2], [0], [0]>} : vector<2x8x8xbf16>, vector<2x8x8xbf16>, vector<2x8x8xf32> -> vector<2x8x8xf32>
    "tpu.trace_stop"() : () -> ()
    %60 = vector.shape_cast %59 : vector<2x8x8xf32> to vector<16x8xf32>
    %c0_30 = arith.constant 0 : index
    %c0_31 = arith.constant 0 : index
    %61 = vector.load %arg16[%c0_30, %c0_31] : memref<16x32xf32, #tpu.memory_space<vmem>>, vector<16x8xf32>
    tpu.vector_store %arg16[%c0_30, %c0_31], %60 {strides = array<i32>} : memref<16x32xf32, #tpu.memory_space<vmem>>, vector<16x8xf32>,
    %c0_32 = arith.constant 0 : index
    %c8 = arith.constant 8 : index
    %62 = vector.load %arg15[%c0_32, %c8] : memref<16x96xf32, #tpu.memory_space<vmem>>, vector<16x8xf32>
    %63 = vector.shape_cast %62 : vector<16x8xf32> to vector<2x8x8xf32>
    %64 = arith.truncf %63 : vector<2x8x8xf32> to vector<2x8x8xbf16>
    %c0_33 = arith.constant 0 : index
    %c40 = arith.constant 40 : index
    %65 = vector.load %arg15[%c0_33, %c40] : memref<16x96xf32, #tpu.memory_space<vmem>>, vector<16x8xf32>
    %66 = vector.shape_cast %65 : vector<16x8xf32> to vector<2x8x8xf32>
    %67 = arith.truncf %66 : vector<2x8x8xf32> to vector<2x8x8xbf16>
    %c0_34 = arith.constant 0 : index
    %c72 = arith.constant 72 : index
    %68 = vector.load %arg15[%c0_34, %c72] : memref<16x96xf32, #tpu.memory_space<vmem>>, vector<16x8xf32>
    %69 = vector.shape_cast %68 : vector<16x8xf32> to vector<2x8x8xf32>
    %70 = arith.truncf %69 : vector<2x8x8xf32> to vector<2x8x8xbf16>
    "tpu.trace_start"() <{level = 10 : i32, message = "bqd,bkd->bqk"}> : () -> ()
    %cst_35 = arith.constant dense<0.000000e+00> : vector<2x8x8xf32>
    %71 = tpu.matmul %64, %67, %cst_35 {dimension_numbers = #tpu.dot_dimension_numbers<[2], [2], [1], [1], [0, 0, 0, 1, 1, 1], [0], [0]>} : vector<2x8x8xbf16>, vector<2x8x8xbf16>, vector<2x8x8xf32> -> vector<2x8x8xf32>
    "tpu.trace_stop"() : () -> ()
    %72 = arith.addf %71, %36 : vector<2x8x8xf32>
    %cst_36 = arith.constant dense<0xFF800000> : vector<2x8xf32>
    %73 = vector.multi_reduction <maximumf>, %72, %cst_36 [2] : vector<2x8x8xf32> to vector<2x8xf32>
    %74 = vector.shape_cast %73 : vector<2x8xf32> to vector<2x8x1xf32>
    %75 = vector.broadcast %74 : vector<2x8x1xf32> to vector<2x8x8xf32>
    %76 = arith.subf %72, %75 : vector<2x8x8xf32>
    %77 = math.exp %76 : vector<2x8x8xf32>
    %cst_37 = arith.constant dense<0.000000e+00> : vector<2x8xf32>
    %78 = vector.multi_reduction <add>, %77, %cst_37 [2] : vector<2x8x8xf32> to vector<2x8xf32>
    %79 = vector.shape_cast %78 : vector<2x8xf32> to vector<2x8x1xf32>
    %80 = tpu.reciprocal %79 {approx = true} : vector<2x8x1xf32> -> vector<2x8x1xf32>
    %81 = vector.broadcast %80 : vector<2x8x1xf32> to vector<2x8x8xf32>
    %82 = arith.mulf %77, %81 : vector<2x8x8xf32>
    %83 = arith.truncf %82 : vector<2x8x8xf32> to vector<2x8x8xbf16>
    "tpu.trace_start"() <{level = 10 : i32, message = "bqk,bkd->bqd"}> : () -> ()
    %cst_38 = arith.constant dense<0.000000e+00> : vector<2x8x8xf32>
    %84 = tpu.matmul %83, %70, %cst_38 {dimension_numbers = #tpu.dot_dimension_numbers<[2], [1], [1], [2], [0, 0, 0, 1, 1, 2], [0], [0]>} : vector<2x8x8xbf16>, vector<2x8x8xbf16>, vector<2x8x8xf32> -> vector<2x8x8xf32>
    "tpu.trace_stop"() : () -> ()
    %85 = vector.shape_cast %84 : vector<2x8x8xf32> to vector<16x8xf32>
    %c0_39 = arith.constant 0 : index
    %c8_40 = arith.constant 8 : index
    %86 = vector.load %arg16[%c0_39, %c8_40] : memref<16x32xf32, #tpu.memory_space<vmem>>, vector<16x8xf32>
    tpu.vector_store %arg16[%c0_39, %c8_40], %85 {strides = array<i32>} : memref<16x32xf32, #tpu.memory_space<vmem>>, vector<16x8xf32>,
    %c0_41 = arith.constant 0 : index
    %c16 = arith.constant 16 : index
    %87 = vector.load %arg15[%c0_41, %c16] : memref<16x96xf32, #tpu.memory_space<vmem>>, vector<16x8xf32>
    %88 = vector.shape_cast %87 : vector<16x8xf32> to vector<2x8x8xf32>
    %89 = arith.truncf %88 : vector<2x8x8xf32> to vector<2x8x8xbf16>
    %c0_42 = arith.constant 0 : index
    %c48 = arith.constant 48 : index
    %90 = vector.load %arg15[%c0_42, %c48] : memref<16x96xf32, #tpu.memory_space<vmem>>, vector<16x8xf32>
    %91 = vector.shape_cast %90 : vector<16x8xf32> to vector<2x8x8xf32>
    %92 = arith.truncf %91 : vector<2x8x8xf32> to vector<2x8x8xbf16>
    %c0_43 = arith.constant 0 : index
    %c80 = arith.constant 80 : index
    %93 = vector.load %arg15[%c0_43, %c80] : memref<16x96xf32, #tpu.memory_space<vmem>>, vector<16x8xf32>
    %94 = vector.shape_cast %93 : vector<16x8xf32> to vector<2x8x8xf32>
    %95 = arith.truncf %94 : vector<2x8x8xf32> to vector<2x8x8xbf16>
    "tpu.trace_start"() <{level = 10 : i32, message = "bqd,bkd->bqk"}> : () -> ()
    %cst_44 = arith.constant dense<0.000000e+00> : vector<2x8x8xf32>
    %96 = tpu.matmul %89, %92, %cst_44 {dimension_numbers = #tpu.dot_dimension_numbers<[2], [2], [1], [1], [0, 0, 0, 1, 1, 1], [0], [0]>} : vector<2x8x8xbf16>, vector<2x8x8xbf16>, vector<2x8x8xf32> -> vector<2x8x8xf32>
    "tpu.trace_stop"() : () -> ()
    %97 = arith.addf %96, %36 : vector<2x8x8xf32>
    %cst_45 = arith.constant dense<0xFF800000> : vector<2x8xf32>
    %98 = vector.multi_reduction <maximumf>, %97, %cst_45 [2] : vector<2x8x8xf32> to vector<2x8xf32>
    %99 = vector.shape_cast %98 : vector<2x8xf32> to vector<2x8x1xf32>
    %100 = vector.broadcast %99 : vector<2x8x1xf32> to vector<2x8x8xf32>
    %101 = arith.subf %97, %100 : vector<2x8x8xf32>
    %102 = math.exp %101 : vector<2x8x8xf32>
    %cst_46 = arith.constant dense<0.000000e+00> : vector<2x8xf32>
    %103 = vector.multi_reduction <add>, %102, %cst_46 [2] : vector<2x8x8xf32> to vector<2x8xf32>
    %104 = vector.shape_cast %103 : vector<2x8xf32> to vector<2x8x1xf32>
    %105 = tpu.reciprocal %104 {approx = true} : vector<2x8x1xf32> -> vector<2x8x1xf32>
    %106 = vector.broadcast %105 : vector<2x8x1xf32> to vector<2x8x8xf32>
    %107 = arith.mulf %102, %106 : vector<2x8x8xf32>
    %108 = arith.truncf %107 : vector<2x8x8xf32> to vector<2x8x8xbf16>
    "tpu.trace_start"() <{level = 10 : i32, message = "bqk,bkd->bqd"}> : () -> ()
    %cst_47 = arith.constant dense<0.000000e+00> : vector<2x8x8xf32>
    %109 = tpu.matmul %108, %95, %cst_47 {dimension_numbers = #tpu.dot_dimension_numbers<[2], [1], [1], [2], [0, 0, 0, 1, 1, 2], [0], [0]>} : vector<2x8x8xbf16>, vector<2x8x8xbf16>, vector<2x8x8xf32> -> vector<2x8x8xf32>
    "tpu.trace_stop"() : () -> ()
    %110 = vector.shape_cast %109 : vector<2x8x8xf32> to vector<16x8xf32>
    %c0_48 = arith.constant 0 : index
    %c16_49 = arith.constant 16 : index
    %111 = vector.load %arg16[%c0_48, %c16_49] : memref<16x32xf32, #tpu.memory_space<vmem>>, vector<16x8xf32>
    tpu.vector_store %arg16[%c0_48, %c16_49], %110 {strides = array<i32>} : memref<16x32xf32, #tpu.memory_space<vmem>>, vector<16x8xf32>,
    %c0_50 = arith.constant 0 : index
    %c24 = arith.constant 24 : index
    %112 = vector.load %arg15[%c0_50, %c24] : memref<16x96xf32, #tpu.memory_space<vmem>>, vector<16x8xf32>
    %113 = vector.shape_cast %112 : vector<16x8xf32> to vector<2x8x8xf32>
    %114 = arith.truncf %113 : vector<2x8x8xf32> to vector<2x8x8xbf16>
    %c0_51 = arith.constant 0 : index
    %c56 = arith.constant 56 : index
    %115 = vector.load %arg15[%c0_51, %c56] : memref<16x96xf32, #tpu.memory_space<vmem>>, vector<16x8xf32>
    %116 = vector.shape_cast %115 : vector<16x8xf32> to vector<2x8x8xf32>
    %117 = arith.truncf %116 : vector<2x8x8xf32> to vector<2x8x8xbf16>
    %c0_52 = arith.constant 0 : index
    %c88 = arith.constant 88 : index
    %118 = vector.load %arg15[%c0_52, %c88] : memref<16x96xf32, #tpu.memory_space<vmem>>, vector<16x8xf32>
    %119 = vector.shape_cast %118 : vector<16x8xf32> to vector<2x8x8xf32>
    %120 = arith.truncf %119 : vector<2x8x8xf32> to vector<2x8x8xbf16>
    "tpu.trace_start"() <{level = 10 : i32, message = "bqd,bkd->bqk"}> : () -> ()
    %cst_53 = arith.constant dense<0.000000e+00> : vector<2x8x8xf32>
    %121 = tpu.matmul %114, %117, %cst_53 {dimension_numbers = #tpu.dot_dimension_numbers<[2], [2], [1], [1], [0, 0, 0, 1, 1, 1], [0], [0]>} : vector<2x8x8xbf16>, vector<2x8x8xbf16>, vector<2x8x8xf32> -> vector<2x8x8xf32>
    "tpu.trace_stop"() : () -> ()
    %122 = arith.addf %121, %36 : vector<2x8x8xf32>
    %cst_54 = arith.constant dense<0xFF800000> : vector<2x8xf32>
    %123 = vector.multi_reduction <maximumf>, %122, %cst_54 [2] : vector<2x8x8xf32> to vector<2x8xf32>
    %124 = vector.shape_cast %123 : vector<2x8xf32> to vector<2x8x1xf32>
    %125 = vector.broadcast %124 : vector<2x8x1xf32> to vector<2x8x8xf32>
    %126 = arith.subf %122, %125 : vector<2x8x8xf32>
    %127 = math.exp %126 : vector<2x8x8xf32>
    %cst_55 = arith.constant dense<0.000000e+00> : vector<2x8xf32>
    %128 = vector.multi_reduction <add>, %127, %cst_55 [2] : vector<2x8x8xf32> to vector<2x8xf32>
    %129 = vector.shape_cast %128 : vector<2x8xf32> to vector<2x8x1xf32>
    %130 = tpu.reciprocal %129 {approx = true} : vector<2x8x1xf32> -> vector<2x8x1xf32>
    %131 = vector.broadcast %130 : vector<2x8x1xf32> to vector<2x8x8xf32>
    %132 = arith.mulf %127, %131 : vector<2x8x8xf32>
    %133 = arith.truncf %132 : vector<2x8x8xf32> to vector<2x8x8xbf16>
    "tpu.trace_start"() <{level = 10 : i32, message = "bqk,bkd->bqd"}> : () -> ()
    %cst_56 = arith.constant dense<0.000000e+00> : vector<2x8x8xf32>
    %134 = tpu.matmul %133, %120, %cst_56 {dimension_numbers = #tpu.dot_dimension_numbers<[2], [1], [1], [2], [0, 0, 0, 1, 1, 2], [0], [0]>} : vector<2x8x8xbf16>, vector<2x8x8xbf16>, vector<2x8x8xf32> -> vector<2x8x8xf32>
    "tpu.trace_stop"() : () -> ()
    %135 = vector.shape_cast %134 : vector<2x8x8xf32> to vector<16x8xf32>
    %c0_57 = arith.constant 0 : index
    %c24_58 = arith.constant 24 : index
    %136 = vector.load %arg16[%c0_57, %c24_58] : memref<16x32xf32, #tpu.memory_space<vmem>>, vector<16x8xf32>
    tpu.vector_store %arg16[%c0_57, %c24_58], %135 {strides = array<i32>} : memref<16x32xf32, #tpu.memory_space<vmem>>, vector<16x8xf32>,
    %c0_59 = arith.constant 0 : index
    %c0_60 = arith.constant 0 : index
    %137 = vector.load %arg16[%c0_59, %c0_60] : memref<16x32xf32, #tpu.memory_space<vmem>>, vector<16x32xf32>
    %138 = arith.truncf %137 : vector<16x32xf32> to vector<16x32xbf16>
    %c0_61 = arith.constant 0 : index
    %c0_62 = arith.constant 0 : index
    %c0_63 = arith.constant 0 : index
    %139 = vector.load %arg7[%c0_61, %c0_62, %c0_63] : memref<1x32x32xbf16, #tpu.memory_space<vmem>>, vector<1x32x32xbf16>
    %140 = vector.shape_cast %139 : vector<1x32x32xbf16> to vector<32x32xbf16>
    %cst_64 = arith.constant dense<0.000000e+00> : vector<16x32xf32>
    %141 = tpu.matmul %138, %140, %cst_64 {dimension_numbers = #tpu.dot_dimension_numbers<[1], [0], [0], [1], [0, 0, 1, 1], [], []>} : vector<16x32xbf16>, vector<32x32xbf16>, vector<16x32xf32> -> vector<16x32xf32>
    %142 = arith.addf %4, %141 : vector<16x32xf32>
    %143 = arith.truncf %142 : vector<16x32xf32> to vector<16x32xbf16>
    %c0_65 = arith.constant 0 : index
    %c0_66 = arith.constant 0 : index
    %c0_67 = arith.constant 0 : index
    %144 = vector.load %arg8[%c0_65, %c0_66, %c0_67] : memref<1x32x64xbf16, #tpu.memory_space<vmem>>, vector<1x32x64xbf16>
    %145 = vector.shape_cast %144 : vector<1x32x64xbf16> to vector<32x64xbf16>
    %cst_68 = arith.constant dense<0.000000e+00> : vector<16x64xf32>
    %146 = tpu.matmul %143, %145, %cst_68 {dimension_numbers = #tpu.dot_dimension_numbers<[1], [0], [0], [1], [0, 0, 1, 1], [], []>} : vector<16x32xbf16>, vector<32x64xbf16>, vector<16x64xf32> -> vector<16x64xf32>
    %c0_69 = arith.constant 0 : index
    %c0_70 = arith.constant 0 : index
    %c0_71 = arith.constant 0 : index
    %147 = vector.load %arg9[%c0_69, %c0_70, %c0_71] : memref<1x1x64xf32, #tpu.memory_space<vmem>>, vector<1x1x64xf32>
    %148 = vector.shape_cast %147 : vector<1x1x64xf32> to vector<1x64xf32>
    %149 = vector.broadcast %148 : vector<1x64xf32> to vector<16x64xf32>
    %150 = arith.addf %146, %149 : vector<16x64xf32>
    %cst_72 = arith.constant 5.000000e-01 : f32
    %151 = vector.broadcast %cst_72 : f32 to vector<16x64xf32>
    %152 = arith.mulf %151, %150 : vector<16x64xf32>
    %cst_73 = arith.constant 0.707106769 : f32
    %153 = vector.broadcast %cst_73 : f32 to vector<16x64xf32>
    %154 = arith.mulf %150, %153 : vector<16x64xf32>
    %155 = math.erf %154 : vector<16x64xf32>
    %cst_74 = arith.constant 1.000000e+00 : f32
    %156 = vector.broadcast %cst_74 : f32 to vector<16x64xf32>
    %157 = arith.addf %156, %155 : vector<16x64xf32>
    %158 = arith.mulf %152, %157 : vector<16x64xf32>
    %159 = arith.truncf %158 : vector<16x64xf32> to vector<16x64xbf16>
    %c0_75 = arith.constant 0 : index
    %c0_76 = arith.constant 0 : index
    %c0_77 = arith.constant 0 : index
    %160 = vector.load %arg10[%c0_75, %c0_76, %c0_77] : memref<1x64x32xbf16, #tpu.memory_space<vmem>>, vector<1x64x32xbf16>
    %161 = vector.shape_cast %160 : vector<1x64x32xbf16> to vector<64x32xbf16>
    %cst_78 = arith.constant dense<0.000000e+00> : vector<16x32xf32>
    %162 = tpu.matmul %159, %161, %cst_78 {dimension_numbers = #tpu.dot_dimension_numbers<[1], [0], [0], [1], [0, 0, 1, 1], [], []>} : vector<16x64xbf16>, vector<64x32xbf16>, vector<16x32xf32> -> vector<16x32xf32>
    %c0_79 = arith.constant 0 : index
    %c0_80 = arith.constant 0 : index
    %c0_81 = arith.constant 0 : index
    %163 = vector.load %arg11[%c0_79, %c0_80, %c0_81] : memref<1x1x32xf32, #tpu.memory_space<vmem>>, vector<1x1x32xf32>
    %164 = vector.shape_cast %163 : vector<1x1x32xf32> to vector<1x32xf32>
    %165 = vector.broadcast %164 : vector<1x32xf32> to vector<16x32xf32>
    %166 = arith.addf %162, %165 : vector<16x32xf32>
    %167 = arith.addf %142, %166 : vector<16x32xf32>
    %c1_i32 = arith.constant 1 : i32
    %168 = arith.cmpi slt, %arg1, %c1_i32 : i32
    %169 = arith.extui %168 : i1 to i32
    %c0_i32_82 = arith.constant 0 : i32
    %170 = arith.cmpi ne, %169, %c0_i32_82 : i32
    scf.if %170 {
      %174 = vector.shape_cast %167 : vector<16x32xf32> to vector<2x8x32xf32>
      %c0_85 = arith.constant 0 : index
      %c0_86 = arith.constant 0 : index
      %c0_87 = arith.constant 0 : index
      %175 = vector.load %arg14[%c0_85, %c0_86, %c0_87] : memref<2x8x32xf32, #tpu.memory_space<vmem>>, vector<2x8x32xf32>
      tpu.vector_store %arg14[%c0_85, %c0_86, %c0_87], %174 {strides = array<i32>} : memref<2x8x32xf32, #tpu.memory_space<vmem>>, vector<2x8x32xf32>,
    } else {
    }
    %c1_i32_83 = arith.constant 1 : i32
    %171 = arith.cmpi eq, %arg1, %c1_i32_83 : i32
    %172 = arith.extui %171 : i1 to i32
    %c0_i32_84 = arith.constant 0 : i32
    %173 = arith.cmpi ne, %172, %c0_i32_84 : i32
    scf.if %173 {
      %c0_85 = arith.constant 0 : index
      %c0_86 = arith.constant 0 : index
      %174 = vector.load %arg12[%c0_85, %c0_86] : memref<1x32xf32, #tpu.memory_space<vmem>>, vector<1x32xf32>
      %c0_87 = arith.constant 0 : index
      %c0_88 = arith.constant 0 : index
      %175 = vector.load %arg13[%c0_87, %c0_88] : memref<1x32xf32, #tpu.memory_space<vmem>>, vector<1x32xf32>
      %cst_89 = arith.constant dense<0.000000e+00> : vector<16xf32>
      %176 = vector.multi_reduction <add>, %167, %cst_89 [1] : vector<16x32xf32> to vector<16xf32>
      %177 = vector.shape_cast %176 : vector<16xf32> to vector<16x1xf32>
      %cst_90 = arith.constant 3.200000e+01 : f32
      %178 = vector.broadcast %cst_90 : f32 to vector<16x1xf32>
      %179 = arith.divf %177, %178 : vector<16x1xf32>
      %180 = vector.broadcast %179 : vector<16x1xf32> to vector<16x32xf32>
      %181 = arith.subf %167, %180 : vector<16x32xf32>
      %182 = arith.mulf %181, %181 : vector<16x32xf32>
      %cst_91 = arith.constant dense<0.000000e+00> : vector<16xf32>
      %183 = vector.multi_reduction <add>, %182, %cst_91 [1] : vector<16x32xf32> to vector<16xf32>
      %184 = vector.shape_cast %183 : vector<16xf32> to vector<16x1xf32>
      %cst_92 = arith.constant 3.200000e+01 : f32
      %185 = vector.broadcast %cst_92 : f32 to vector<16x1xf32>
      %186 = arith.divf %184, %185 : vector<16x1xf32>
      %187 = vector.broadcast %179 : vector<16x1xf32> to vector<16x32xf32>
      %188 = arith.subf %167, %187 : vector<16x32xf32>
      %cst_93 = arith.constant 9.99999974E-6 : f32
      %189 = vector.broadcast %cst_93 : f32 to vector<16x1xf32>
      %190 = arith.addf %186, %189 : vector<16x1xf32>
      %191 = math.rsqrt %190 : vector<16x1xf32>
      %192 = vector.broadcast %191 : vector<16x1xf32> to vector<16x32xf32>
      %193 = arith.mulf %188, %192 : vector<16x32xf32>
      %194 = vector.broadcast %174 : vector<1x32xf32> to vector<16x32xf32>
      %195 = arith.mulf %193, %194 : vector<16x32xf32>
      %196 = vector.broadcast %175 : vector<1x32xf32> to vector<16x32xf32>
      %197 = arith.addf %195, %196 : vector<16x32xf32>
      %198 = vector.shape_cast %197 : vector<16x32xf32> to vector<2x8x32xf32>
      %c0_94 = arith.constant 0 : index
      %c0_95 = arith.constant 0 : index
      %c0_96 = arith.constant 0 : index
      %199 = vector.load %arg14[%c0_94, %c0_95, %c0_96] : memref<2x8x32xf32, #tpu.memory_space<vmem>>, vector<2x8x32xf32>
      tpu.vector_store %arg14[%c0_94, %c0_95, %c0_96], %198 {strides = array<i32>} : memref<2x8x32xf32, #tpu.memory_space<vmem>>, vector<2x8x32xf32>,
    } else {
    }
    return
  }
  func.func @transform_0(%arg0: i32, %arg1: i32) -> (i32, i32, i32) {
    %c0_i32 = arith.constant 0 : i32
    %c0_i32_0 = arith.constant 0 : i32
    %c0_i32_1 = arith.constant 0 : i32
    return %arg0, %c0_i32, %c0_i32_0 : i32, i32, i32
  }
  func.func @transform_1(%arg0: i32, %arg1: i32) -> (i32, i32, i32) {
    %c0_i32 = arith.constant 0 : i32
    %c0_i32_0 = arith.constant 0 : i32
    %c0_i32_1 = arith.constant 0 : i32
    return %arg0, %c0_i32, %c0_i32_0 : i32, i32, i32
  }
  func.func @transform_2(%arg0: i32, %arg1: i32) -> (i32, i32, i32) {
    %c0_i32 = arith.constant 0 : i32
    %c0_i32_0 = arith.constant 0 : i32
    %c0_i32_1 = arith.constant 0 : i32
    return %arg1, %c0_i32, %c0_i32_0 : i32, i32, i32
  }
  func.func @transform_3(%arg0: i32, %arg1: i32) -> (i32, i32, i32) {
    %c0_i32 = arith.constant 0 : i32
    %c0_i32_0 = arith.constant 0 : i32
    %c0_i32_1 = arith.constant 0 : i32
    return %arg1, %c0_i32, %c0_i32_0 : i32, i32, i32
  }
  func.func @transform_4(%arg0: i32, %arg1: i32) -> (i32, i32, i32) {
    %c0_i32 = arith.constant 0 : i32
    %c0_i32_0 = arith.constant 0 : i32
    %c0_i32_1 = arith.constant 0 : i32
    return %arg1, %c0_i32, %c0_i32_0 : i32, i32, i32
  }
  func.func @transform_5(%arg0: i32, %arg1: i32) -> (i32, i32, i32) {
    %c0_i32 = arith.constant 0 : i32
    %c0_i32_0 = arith.constant 0 : i32
    %c0_i32_1 = arith.constant 0 : i32
    return %arg1, %c0_i32, %c0_i32_0 : i32, i32, i32
  }
  func.func @transform_6(%arg0: i32, %arg1: i32) -> (i32, i32, i32) {
    %c0_i32 = arith.constant 0 : i32
    %c0_i32_0 = arith.constant 0 : i32
    %c0_i32_1 = arith.constant 0 : i32
    return %arg1, %c0_i32, %c0_i32_0 : i32, i32, i32
  }
  func.func @transform_7(%arg0: i32, %arg1: i32) -> (i32, i32, i32) {
    %c0_i32 = arith.constant 0 : i32
    %c0_i32_0 = arith.constant 0 : i32
    %c0_i32_1 = arith.constant 0 : i32
    return %arg1, %c0_i32, %c0_i32_0 : i32, i32, i32
  }
  func.func @transform_8(%arg0: i32, %arg1: i32) -> (i32, i32, i32) {
    %c0_i32 = arith.constant 0 : i32
    %c0_i32_0 = arith.constant 0 : i32
    %c0_i32_1 = arith.constant 0 : i32
    return %arg1, %c0_i32, %c0_i32_0 : i32, i32, i32
  }
  func.func @transform_9(%arg0: i32, %arg1: i32) -> (i32, i32, i32) {
    %c0_i32 = arith.constant 0 : i32
    %c0_i32_0 = arith.constant 0 : i32
    %c0_i32_1 = arith.constant 0 : i32
    return %arg1, %c0_i32, %c0_i32_0 : i32, i32, i32
  }
  func.func @transform_10(%arg0: i32, %arg1: i32) -> (i32, i32) {
    %c0_i32 = arith.constant 0 : i32
    %c0_i32_0 = arith.constant 0 : i32
    %c0_i32_1 = arith.constant 0 : i32
    return %c0_i32, %c0_i32_0 : i32, i32
  }
  func.func @transform_11(%arg0: i32, %arg1: i32) -> (i32, i32) {
    %c0_i32 = arith.constant 0 : i32
    %c0_i32_0 = arith.constant 0 : i32
    %c0_i32_1 = arith.constant 0 : i32
    return %c0_i32, %c0_i32_0 : i32, i32
  }
  func.func @transform_12(%arg0: i32, %arg1: i32) -> (i32, i32, i32) {
    %c0_i32 = arith.constant 0 : i32
    %c0_i32_0 = arith.constant 0 : i32
    %c0_i32_1 = arith.constant 0 : i32
    return %arg0, %c0_i32, %c0_i32_0 : i32, i32, i32
  }
}

</mosaic_0001>

<llo_original>
// kernel: tpu_custom_call.1
$region0: #{tpu_custom_call.1}
  #allocation0 [shape = 'u32[]', space=smem, size = 0x4, offset = 0x4, fixed_abs, tag = 'smem constant byte address 0x4 - core index']
  #allocation1 [shape = 'u32[144,128]{1,0:T(1,128)}', space=vmem, size = 0x12000, scoped, tag = 'internal scratch']
  #allocation2 [shape = 'f32[16,96]{1,0:T(8,128)}', space=vmem, size = 0x2000, scoped, tag = 'scratch operand']
  #allocation3 [shape = 'f32[16,32]{1,0:T(8,128)}', space=vmem, size = 0x2000, scoped, tag = 'scratch operand']
  %s0 = inlined_call_operand.hbm [shape: f32[2,8,32], index: 0, kind: input, shape index: {}]
  %s1 = inlined_call_operand.hbm [shape: f32[2,8,8], index: 1, kind: input, shape index: {}]
  %s2 = inlined_call_operand.vmem [shape: f32[2,1,32], index: 2, kind: input, shape index: {}]
  %s3 = inlined_call_operand.vmem [shape: f32[2,1,32], index: 3, kind: input, shape index: {}]
  %s4 = inlined_call_operand.vmem [shape: bf16[2,32,96], index: 4, kind: input, shape index: {}]
  %s5 = inlined_call_operand.vmem [shape: bf16[2,32,32], index: 5, kind: input, shape index: {}]
  %s6 = inlined_call_operand.vmem [shape: bf16[2,32,64], index: 6, kind: input, shape index: {}]
  %s7 = inlined_call_operand.vmem [shape: f32[2,1,64], index: 7, kind: input, shape index: {}]
  %s8 = inlined_call_operand.vmem [shape: bf16[2,64,32], index: 8, kind: input, shape index: {}]
  %s9 = inlined_call_operand.vmem [shape: f32[2,1,32], index: 9, kind: input, shape index: {}]
  %s10 = inlined_call_operand.vmem [shape: f32[1,32], index: 10, kind: input, shape index: {}]
  %s11 = inlined_call_operand.vmem [shape: f32[1,32], index: 11, kind: input, shape index: {}]
  %s12 = inlined_call_operand.hbm [shape: f32[2,8,32], index: 12, kind: output, shape index: {}]
  %s13 = sld [smem:[#allocation0]]
  $region101: #{tpu_custom_call.1} parent=0
    _
  %s15 = ssub.s32 1, %s13
  %s16 = scalar_select 0, %s15, %s13
  $region1: #{tpu_custom_call.1} parent=0
    #allocation4 [shape = 'u8[8192]{0}', space=vmem, size = 0x2000, scoped, tag = 'input window, operand 0, single buffered']
    #allocation5 [shape = 's32[2]{0}', space=sflag, size = 0x8, scoped, tag = 'scoped memory for tpu_custom_call.1']
    #allocation6 [shape = 's32[2]{0}', space=sflag, size = 0x8, scoped, tag = 'scoped memory for tpu_custom_call.1']
    #allocation7 [shape = 'u8[8192]{0}', space=vmem, size = 0x2000, scoped, tag = 'input window, operand 1, single buffered']
    #allocation8 [shape = 's32[1]{0}', space=sflag, size = 0x4, scoped, tag = 'scoped memory for tpu_custom_call.1']
    #allocation9 [shape = 'u8[8192]{0}', space=vmem, size = 0x2000, scoped, tag = 'output window, operand 0, single buffered']
    %17 = vsyncpa [#allocation5], 0
    %18 = vsyncpa [#allocation8], 0
    %19 = vsyncpa [#allocation6], 0
    loop: start=0, step=1, limit=4
    $region2: #{tpu_custom_call.1} parent=1 // loop_pre_header
      _
    $region3: #{tpu_custom_call.1} parent=1 // loop_header
      %s21 = sphi 0, %s25
      %p22 = scmp.ge.s32.totalorder %s21, 4
      %s28 = sphi 0, %s40
      %s29 = sphi 0, %s36
      %s30 = sphi 0, %s28
      %s31 = sphi 0, %s29
      %s32 = sphi 0, %s30
      %s33 = sphi 0, %s31
      %s43 = sphi 0, %s45
      %s46 = sphi 0, %s43
      %s47 = sphi 0, %s46
      %s63 = sphi 0, %s47
      %s69 = sphi 0, %s71
      %s72 = sphi 0, %s69
      %s73 = sphi 0, %s72
      %s89 = sphi 0, %s73
      %s95 = sphi 0, %s97
      %s98 = sphi 0, %s95
      %s99 = sphi 0, %s98
      %s115 = sphi 0, %s99
      %s121 = sphi 0, %s123
      %s124 = sphi 0, %s121
      %s125 = sphi 0, %s124
      %s141 = sphi 0, %s125
      %s147 = sphi 0, %s149
      %s150 = sphi 0, %s147
      %s151 = sphi 0, %s150
      %s167 = sphi 0, %s151
      %s173 = sphi 0, %s175
      %s176 = sphi 0, %s173
      %s177 = sphi 0, %s176
      %s193 = sphi 0, %s177
      %s199 = sphi 0, %s201
      %s202 = sphi 0, %s199
      %s203 = sphi 0, %s202
      %s219 = sphi 0, %s203
      %s225 = sphi 0, %s227
      %s228 = sphi 0, %s225
      %s229 = sphi 0, %s228
      %s245 = sphi 0, %s229
      %s251 = sphi 0, %s253
      %s254 = sphi 0, %s251
      %s255 = sphi 0, %s254
      %s271 = sphi 0, %s255
      %s277 = sphi 0, %s279
      %s280 = sphi 0, %s277
      %s281 = sphi 0, %s280
      %s297 = sphi 0, %s281
      %s301 = sphi 0, %s301
      %s303 = sphi 0, %s301
      %s304 = sphi 0, %s303
      %s318 = sphi 0, %s304
      %s322 = sphi 0, %s322
      %s324 = sphi 0, %s322
      %s325 = sphi 0, %s324
      %s339 = sphi 0, %s325
      %s345 = sphi 0, %s347
      %s348 = sphi 0, %s345
      %s349 = sphi 0, %s348
      %s365 = sphi 0, %s349
    $region4: #{tpu_custom_call.1} parent=1 // loop_header_branch
      %24 = sbr.rel (%p22) target = $region8
    $region5: #{tpu_custom_call.1} parent=1 // loop_body
      %s26 = ssub.s32 %s21, 1
      %s27 = ssub.s32 %s21, 2
      %s34 = sadd.s32 1, %s29
      %p35 = scmp.ge.s32.totalorder %s34, 2
      %s36 = scalar_select %p35, 0, %s34
      %s37 = sadd.s32 1, %s28
      %s38 = scalar_select %p35, %s37, %s28
      %p39 = scmp.ge.s32.totalorder %s38, 1
      %s40 = scalar_select %p39, 0, %s38
      %s41 = ssub.s32 %s28, %s40
      %p42 = scmp.eq.s32.totalorder %s41, 0
      %s44 = sadd.s32 %s43, 1
      %s45 = scalar_select %p42, %s43, %s44
      %p48 = pneg %p42
      %p49 = scmp.eq.s32.totalorder %s21, 1
      %p50 = por %p48, %p49
      %p51 = scmp.ne.s32.totalorder %s43, %s46
      %p52 = scmp.eq.s32.totalorder %s21, 0
      %p53 = por %p51, %p52
      %p54 = scmp.ne.s32.totalorder %s43, %s46
      %p55 = scmp.eq.s32.totalorder %s26, 1
      %p56 = por %p54, %p55
      %p57 = scmp.ne.s32.totalorder %s46, %s47
      %p58 = scmp.eq.s32.totalorder %s26, 0
      %p59 = por %p57, %p58
      %p60 = scmp.ne.s32.totalorder %s46, %s47
      %p61 = scmp.eq.s32.totalorder %s27, 1
      %p62 = por %p60, %p61
      %p64 = scmp.ne.s32.totalorder %s47, %s63
      %p65 = scmp.eq.s32.totalorder %s27, 0
      %p66 = por %p64, %p65
      %s67 = ssub.s32 %s28, %s40
      %p68 = scmp.eq.s32.totalorder %s67, 0
      %s70 = sadd.s32 %s69, 1
      %s71 = scalar_select %p68, %s69, %s70
      %p74 = pneg %p68
      %p75 = scmp.eq.s32.totalorder %s21, 1
      %p76 = por %p74, %p75
      %p77 = scmp.ne.s32.totalorder %s69, %s72
      %p78 = scmp.eq.s32.totalorder %s21, 0
      %p79 = por %p77, %p78
      %p80 = scmp.ne.s32.totalorder %s69, %s72
      %p81 = scmp.eq.s32.totalorder %s26, 1
      %p82 = por %p80, %p81
      %p83 = scmp.ne.s32.totalorder %s72, %s73
      %p84 = scmp.eq.s32.totalorder %s26, 0
      %p85 = por %p83, %p84
      %p86 = scmp.ne.s32.totalorder %s72, %s73
      %p87 = scmp.eq.s32.totalorder %s27, 1
      %p88 = por %p86, %p87
      %p90 = scmp.ne.s32.totalorder %s73, %s89
      %p91 = scmp.eq.s32.totalorder %s27, 0
      %p92 = por %p90, %p91
      %s93 = ssub.s32 %s29, %s36
      %p94 = scmp.eq.s32.totalorder %s93, 0
      %s96 = sadd.s32 %s95, 1
      %s97 = scalar_select %p94, %s95, %s96
      %p100 = pneg %p94
      %p101 = scmp.eq.s32.totalorder %s21, 1
      %p102 = por %p100, %p101
      %p103 = scmp.ne.s32.totalorder %s95, %s98
      %p104 = scmp.eq.s32.totalorder %s21, 0
      %p105 = por %p103, %p104
      %p106 = scmp.ne.s32.totalorder %s95, %s98
      %p107 = scmp.eq.s32.totalorder %s26, 1
      %p108 = por %p106, %p107
      %p109 = scmp.ne.s32.totalorder %s98, %s99
      %p110 = scmp.eq.s32.totalorder %s26, 0
      %p111 = por %p109, %p110
      %p112 = scmp.ne.s32.totalorder %s98, %s99
      %p113 = scmp.eq.s32.totalorder %s27, 1
      %p114 = por %p112, %p113
      %p116 = scmp.ne.s32.totalorder %s99, %s115
      %p117 = scmp.eq.s32.totalorder %s27, 0
      %p118 = por %p116, %p117
      %s119 = ssub.s32 %s29, %s36
      %p120 = scmp.eq.s32.totalorder %s119, 0
      %s122 = sadd.s32 %s121, 1
      %s123 = scalar_select %p120, %s121, %s122
      %p126 = pneg %p120
      %p127 = scmp.eq.s32.totalorder %s21, 1
      %p128 = por %p126, %p127
      %p129 = scmp.ne.s32.totalorder %s121, %s124
      %p130 = scmp.eq.s32.totalorder %s21, 0
      %p131 = por %p129, %p130
      %p132 = scmp.ne.s32.totalorder %s121, %s124
      %p133 = scmp.eq.s32.totalorder %s26, 1
      %p134 = por %p132, %p133
      %p135 = scmp.ne.s32.totalorder %s124, %s125
      %p136 = scmp.eq.s32.totalorder %s26, 0
      %p137 = por %p135, %p136
      %p138 = scmp.ne.s32.totalorder %s124, %s125
      %p139 = scmp.eq.s32.totalorder %s27, 1
      %p140 = por %p138, %p139
      %p142 = scmp.ne.s32.totalorder %s125, %s141
      %p143 = scmp.eq.s32.totalorder %s27, 0
      %p144 = por %p142, %p143
      %s145 = ssub.s32 %s29, %s36
      %p146 = scmp.eq.s32.totalorder %s145, 0
      %s148 = sadd.s32 %s147, 1
      %s149 = scalar_select %p146, %s147, %s148
      %p152 = pneg %p146
      %p153 = scmp.eq.s32.totalorder %s21, 1
      %p154 = por %p152, %p153
      %p155 = scmp.ne.s32.totalorder %s147, %s150
      %p156 = scmp.eq.s32.totalorder %s21, 0
      %p157 = por %p155, %p156
      %p158 = scmp.ne.s32.totalorder %s147, %s150
      %p159 = scmp.eq.s32.totalorder %s26, 1
      %p160 = por %p158, %p159
      %p161 = scmp.ne.s32.totalorder %s150, %s151
      %p162 = scmp.eq.s32.totalorder %s26, 0
      %p163 = por %p161, %p162
      %p164 = scmp.ne.s32.totalorder %s150, %s151
      %p165 = scmp.eq.s32.totalorder %s27, 1
      %p166 = por %p164, %p165
      %p168 = scmp.ne.s32.totalorder %s151, %s167
      %p169 = scmp.eq.s32.totalorder %s27, 0
      %p170 = por %p168, %p169
      %s171 = ssub.s32 %s29, %s36
      %p172 = scmp.eq.s32.totalorder %s171, 0
      %s174 = sadd.s32 %s173, 1
      %s175 = scalar_select %p172, %s173, %s174
      %p178 = pneg %p172
      %p179 = scmp.eq.s32.totalorder %s21, 1
      %p180 = por %p178, %p179
      %p181 = scmp.ne.s32.totalorder %s173, %s176
      %p182 = scmp.eq.s32.totalorder %s21, 0
      %p183 = por %p181, %p182
      %p184 = scmp.ne.s32.totalorder %s173, %s176
      %p185 = scmp.eq.s32.totalorder %s26, 1
      %p186 = por %p184, %p185
      %p187 = scmp.ne.s32.totalorder %s176, %s177
      %p188 = scmp.eq.s32.totalorder %s26, 0
      %p189 = por %p187, %p188
      %p190 = scmp.ne.s32.totalorder %s176, %s177
      %p191 = scmp.eq.s32.totalorder %s27, 1
      %p192 = por %p190, %p191
      %p194 = scmp.ne.s32.totalorder %s177, %s193
      %p195 = scmp.eq.s32.totalorder %s27, 0
      %p196 = por %p194, %p195
      %s197 = ssub.s32 %s29, %s36
      %p198 = scmp.eq.s32.totalorder %s197, 0
      %s200 = sadd.s32 %s199, 1
      %s201 = scalar_select %p198, %s199, %s200
      %p204 = pneg %p198
      %p205 = scmp.eq.s32.totalorder %s21, 1
      %p206 = por %p204, %p205
      %p207 = scmp.ne.s32.totalorder %s199, %s202
      %p208 = scmp.eq.s32.totalorder %s21, 0
      %p209 = por %p207, %p208
      %p210 = scmp.ne.s32.totalorder %s199, %s202
      %p211 = scmp.eq.s32.totalorder %s26, 1
      %p212 = por %p210, %p211
      %p213 = scmp.ne.s32.totalorder %s202, %s203
      %p214 = scmp.eq.s32.totalorder %s26, 0
      %p215 = por %p213, %p214
      %p216 = scmp.ne.s32.totalorder %s202, %s203
      %p217 = scmp.eq.s32.totalorder %s27, 1
      %p218 = por %p216, %p217
      %p220 = scmp.ne.s32.totalorder %s203, %s219
      %p221 = scmp.eq.s32.totalorder %s27, 0
      %p222 = por %p220, %p221
      %s223 = ssub.s32 %s29, %s36
      %p224 = scmp.eq.s32.totalorder %s223, 0
      %s226 = sadd.s32 %s225, 1
      %s227 = scalar_select %p224, %s225, %s226
      %p230 = pneg %p224
      %p231 = scmp.eq.s32.totalorder %s21, 1
      %p232 = por %p230, %p231
      %p233 = scmp.ne.s32.totalorder %s225, %s228
      %p234 = scmp.eq.s32.totalorder %s21, 0
      %p235 = por %p233, %p234
      %p236 = scmp.ne.s32.totalorder %s225, %s228
      %p237 = scmp.eq.s32.totalorder %s26, 1
      %p238 = por %p236, %p237
      %p239 = scmp.ne.s32.totalorder %s228, %s229
      %p240 = scmp.eq.s32.totalorder %s26, 0
      %p241 = por %p239, %p240
      %p242 = scmp.ne.s32.totalorder %s228, %s229
      %p243 = scmp.eq.s32.totalorder %s27, 1
      %p244 = por %p242, %p243
      %p246 = scmp.ne.s32.totalorder %s229, %s245
      %p247 = scmp.eq.s32.totalorder %s27, 0
      %p248 = por %p246, %p247
      %s249 = ssub.s32 %s29, %s36
      %p250 = scmp.eq.s32.totalorder %s249, 0
      %s252 = sadd.s32 %s251, 1
      %s253 = scalar_select %p250, %s251, %s252
      %p256 = pneg %p250
      %p257 = scmp.eq.s32.totalorder %s21, 1
      %p258 = por %p256, %p257
      %p259 = scmp.ne.s32.totalorder %s251, %s254
      %p260 = scmp.eq.s32.totalorder %s21, 0
      %p261 = por %p259, %p260
      %p262 = scmp.ne.s32.totalorder %s251, %s254
      %p263 = scmp.eq.s32.totalorder %s26, 1
      %p264 = por %p262, %p263
      %p265 = scmp.ne.s32.totalorder %s254, %s255
      %p266 = scmp.eq.s32.totalorder %s26, 0
      %p267 = por %p265, %p266
      %p268 = scmp.ne.s32.totalorder %s254, %s255
      %p269 = scmp.eq.s32.totalorder %s27, 1
      %p270 = por %p268, %p269
      %p272 = scmp.ne.s32.totalorder %s255, %s271
      %p273 = scmp.eq.s32.totalorder %s27, 0
      %p274 = por %p272, %p273
      %s275 = ssub.s32 %s29, %s36
      %p276 = scmp.eq.s32.totalorder %s275, 0
      %s278 = sadd.s32 %s277, 1
      %s279 = scalar_select %p276, %s277, %s278
      %p282 = pneg %p276
      %p283 = scmp.eq.s32.totalorder %s21, 1
      %p284 = por %p282, %p283
      %p285 = scmp.ne.s32.totalorder %s277, %s280
      %p286 = scmp.eq.s32.totalorder %s21, 0
      %p287 = por %p285, %p286
      %p288 = scmp.ne.s32.totalorder %s277, %s280
      %p289 = scmp.eq.s32.totalorder %s26, 1
      %p290 = por %p288, %p289
      %p291 = scmp.ne.s32.totalorder %s280, %s281
      %p292 = scmp.eq.s32.totalorder %s26, 0
      %p293 = por %p291, %p292
      %p294 = scmp.ne.s32.totalorder %s280, %s281
      %p295 = scmp.eq.s32.totalorder %s27, 1
      %p296 = por %p294, %p295
      %p298 = scmp.ne.s32.totalorder %s281, %s297
      %p299 = scmp.eq.s32.totalorder %s27, 0
      %p300 = por %p298, %p299
      %s302 = sadd.s32 %s301, 1
      %p305 = scmp.eq.s32.totalorder %s21, 1
      %p306 = scmp.ne.s32.totalorder %s301, %s303
      %p307 = scmp.eq.s32.totalorder %s21, 0
      %p308 = por %p306, %p307
      %p309 = scmp.ne.s32.totalorder %s301, %s303
      %p310 = scmp.eq.s32.totalorder %s26, 1
      %p311 = por %p309, %p310
      %p312 = scmp.ne.s32.totalorder %s303, %s304
      %p313 = scmp.eq.s32.totalorder %s26, 0
      %p314 = por %p312, %p313
      %p315 = scmp.ne.s32.totalorder %s303, %s304
      %p316 = scmp.eq.s32.totalorder %s27, 1
      %p317 = por %p315, %p316
      %p319 = scmp.ne.s32.totalorder %s304, %s318
      %p320 = scmp.eq.s32.totalorder %s27, 0
      %p321 = por %p319, %p320
      %s323 = sadd.s32 %s322, 1
      %p326 = scmp.eq.s32.totalorder %s21, 1
      %p327 = scmp.ne.s32.totalorder %s322, %s324
      %p328 = scmp.eq.s32.totalorder %s21, 0
      %p329 = por %p327, %p328
      %p330 = scmp.ne.s32.totalorder %s322, %s324
      %p331 = scmp.eq.s32.totalorder %s26, 1
      %p332 = por %p330, %p331
      %p333 = scmp.ne.s32.totalorder %s324, %s325
      %p334 = scmp.eq.s32.totalorder %s26, 0
      %p335 = por %p333, %p334
      %p336 = scmp.ne.s32.totalorder %s324, %s325
      %p337 = scmp.eq.s32.totalorder %s27, 1
      %p338 = por %p336, %p337
      %p340 = scmp.ne.s32.totalorder %s325, %s339
      %p341 = scmp.eq.s32.totalorder %s27, 0
      %p342 = por %p340, %p341
      %s343 = ssub.s32 %s28, %s40
      %p344 = scmp.eq.s32.totalorder %s343, 0
      %s346 = sadd.s32 %s345, 1
      %s347 = scalar_select %p344, %s345, %s346
      %p350 = pneg %p344
      %p351 = scmp.eq.s32.totalorder %s21, 1
      %p352 = por %p350, %p351
      %p353 = scmp.ne.s32.totalorder %s345, %s348
      %p354 = scmp.eq.s32.totalorder %s21, 0
      %p355 = por %p353, %p354
      %p356 = scmp.ne.s32.totalorder %s345, %s348
      %p357 = scmp.eq.s32.totalorder %s26, 1
      %p358 = por %p356, %p357
      %p359 = scmp.ne.s32.totalorder %s348, %s349
      %p360 = scmp.eq.s32.totalorder %s26, 0
      %p361 = por %p359, %p360
      %p362 = scmp.ne.s32.totalorder %s348, %s349
      %p363 = scmp.eq.s32.totalorder %s27, 1
      %p364 = por %p362, %p363
      %p366 = scmp.ne.s32.totalorder %s349, %s365
      %p367 = scmp.eq.s32.totalorder %s27, 0
      %p368 = por %p366, %p367
      %p369 = scmp.le.s32.totalorder 1, %s21
      %p370 = scmp.lt.s32.totalorder %s21, 3
      %p371 = pnand %p369, %p370
      %p372 = pneg %p371
      // Predicated region
      $region9: #{tpu_custom_call.1} parent=5 // pred_check
        _
      $region10: #{tpu_custom_call.1} parent=5 // pred_check_branch
        %374 = sbr.rel (%p371) target = $region12
      $region11: #{tpu_custom_call.1} parent=5 // pred_region
        %s375 = ssub.s32 %s21, 1
        // Predicated region
        $region13: #{tpu_custom_call.1} parent=11 // pred_check
          %p376 = pneg %p59
        $region14: #{tpu_custom_call.1} parent=11 // pred_check_branch
          %378 = sbr.rel (%p376) target = $region16
        $region15: #{tpu_custom_call.1} parent=11 // pred_region
          %s379 = smul.u32 2, %s30
          %s381 = ssub.s32 256, 256
          %382 = vsyncadd [#allocation5], %s381
          %s383 = smul.addr %s379, 128
          %s384 = scalar_lea.hbm %s0, %s383
          %s385 = sshll.u32 [#allocation4], 4
          %s386 = int_to_ptr.vmem [resolvable:$true] %s385
          %391 = dma.hbm_to_vmem [thread:$0]  %s384, 256, %s386, [#allocation5], 128, 128, 8
        $region16: #{tpu_custom_call.1} parent=11 // pred_fallthru
          _
        // Predicated region
        $region17: #{tpu_custom_call.1} parent=11 // pred_check
          %p392 = pneg %p85
        $region18: #{tpu_custom_call.1} parent=11 // pred_check_branch
          %394 = sbr.rel (%p392) target = $region20
        $region19: #{tpu_custom_call.1} parent=11 // pred_region
          %s395 = smul.u32 2, %s30
          %s397 = ssub.s32 256, 256
          %398 = vsyncadd [#allocation8], %s397
          %s399 = smul.addr %s395, 128
          %s400 = scalar_lea.hbm %s1, %s399
          %s401 = sshll.u32 [#allocation7], 4
          %s402 = int_to_ptr.vmem [resolvable:$true] %s401
          %407 = dma.hbm_to_vmem [thread:$0]  %s400, 256, %s402, [#allocation8], 128, 128, 8
        $region20: #{tpu_custom_call.1} parent=11 // pred_fallthru
          _
        // Predicated region
        $region21: #{tpu_custom_call.1} parent=11 // pred_check
          %p408 = pneg %p314
        $region22: #{tpu_custom_call.1} parent=11 // pred_check_branch
          %410 = sbr.rel (%p408) target = $region24
        $region23: #{tpu_custom_call.1} parent=11 // pred_region
          _
        $region24: #{tpu_custom_call.1} parent=11 // pred_fallthru
          _
        // Predicated region
        $region25: #{tpu_custom_call.1} parent=11 // pred_check
          %p411 = pneg %p335
        $region26: #{tpu_custom_call.1} parent=11 // pred_check_branch
          %413 = sbr.rel (%p411) target = $region28
        $region27: #{tpu_custom_call.1} parent=11 // pred_region
          _
        $region28: #{tpu_custom_call.1} parent=11 // pred_fallthru
          _
      $region12: #{tpu_custom_call.1} parent=5 // pred_fallthru
        _
      %p414 = scmp.lt.s32.totalorder %s21, 2
      // Predicated region
      $region29: #{tpu_custom_call.1} parent=5 // pred_check
        %p415 = pneg %p414
      $region30: #{tpu_custom_call.1} parent=5 // pred_check_branch
        %417 = sbr.rel (%p415) target = $region32
      $region31: #{tpu_custom_call.1} parent=5 // pred_region
        // Predicated region
        $region33: #{tpu_custom_call.1} parent=31 // pred_check
          %p418 = pneg %p105
        $region34: #{tpu_custom_call.1} parent=31 // pred_check_branch
          %420 = sbr.rel (%p418) target = $region36
        $region35: #{tpu_custom_call.1} parent=31 // pred_region
          %p421 = scmp.lt.s32.totalorder %s29, 1
          %s422 = scalar_select %p421, %s29, 1
          %s423 = scalar_lea.vmem %s2, %s422
        $region36: #{tpu_custom_call.1} parent=31 // pred_fallthru
          _
        // Predicated region
        $region37: #{tpu_custom_call.1} parent=31 // pred_check
          %p424 = pneg %p131
        $region38: #{tpu_custom_call.1} parent=31 // pred_check_branch
          %426 = sbr.rel (%p424) target = $region40
        $region39: #{tpu_custom_call.1} parent=31 // pred_region
          %p427 = scmp.lt.s32.totalorder %s29, 1
          %s428 = scalar_select %p427, %s29, 1
          %s429 = scalar_lea.vmem %s3, %s428
        $region40: #{tpu_custom_call.1} parent=31 // pred_fallthru
          _
        // Predicated region
        $region41: #{tpu_custom_call.1} parent=31 // pred_check
          %p430 = pneg %p157
        $region42: #{tpu_custom_call.1} parent=31 // pred_check_branch
          %432 = sbr.rel (%p430) target = $region44
        $region43: #{tpu_custom_call.1} parent=31 // pred_region
          %p433 = scmp.lt.s32.totalorder %s29, 1
          %s434 = scalar_select %p433, %s29, 1
          %s435 = smul.addr %s434, 4
          %s436 = smul.addr %s435, 4
          %s437 = scalar_lea.vmem %s4, %s436
        $region44: #{tpu_custom_call.1} parent=31 // pred_fallthru
          _
        // Predicated region
        $region45: #{tpu_custom_call.1} parent=31 // pred_check
          %p438 = pneg %p183
        $region46: #{tpu_custom_call.1} parent=31 // pred_check_branch
          %440 = sbr.rel (%p438) target = $region48
        $region47: #{tpu_custom_call.1} parent=31 // pred_region
          %p441 = scmp.lt.s32.totalorder %s29, 1
          %s442 = scalar_select %p441, %s29, 1
          %s443 = smul.addr %s442, 4
          %s444 = smul.addr %s443, 4
          %s445 = scalar_lea.vmem %s5, %s444
        $region48: #{tpu_custom_call.1} parent=31 // pred_fallthru
          _
        // Predicated region
        $region49: #{tpu_custom_call.1} parent=31 // pred_check
          %p446 = pneg %p209
        $region50: #{tpu_custom_call.1} parent=31 // pred_check_branch
          %448 = sbr.rel (%p446) target = $region52
        $region51: #{tpu_custom_call.1} parent=31 // pred_region
          %p449 = scmp.lt.s32.totalorder %s29, 1
          %s450 = scalar_select %p449, %s29, 1
          %s451 = smul.addr %s450, 4
          %s452 = smul.addr %s451, 4
          %s453 = scalar_lea.vmem %s6, %s452
        $region52: #{tpu_custom_call.1} parent=31 // pred_fallthru
          _
        // Predicated region
        $region53: #{tpu_custom_call.1} parent=31 // pred_check
          %p454 = pneg %p235
        $region54: #{tpu_custom_call.1} parent=31 // pred_check_branch
          %456 = sbr.rel (%p454) target = $region56
        $region55: #{tpu_custom_call.1} parent=31 // pred_region
          %p457 = scmp.lt.s32.totalorder %s29, 1
          %s458 = scalar_select %p457, %s29, 1
          %s459 = scalar_lea.vmem %s7, %s458
        $region56: #{tpu_custom_call.1} parent=31 // pred_fallthru
          _
        // Predicated region
        $region57: #{tpu_custom_call.1} parent=31 // pred_check
          %p460 = pneg %p261
        $region58: #{tpu_custom_call.1} parent=31 // pred_check_branch
          %462 = sbr.rel (%p460) target = $region60
        $region59: #{tpu_custom_call.1} parent=31 // pred_region
          %p463 = scmp.lt.s32.totalorder %s29, 1
          %s464 = scalar_select %p463, %s29, 1
          %s465 = smul.addr %s464, 8
          %s466 = smul.addr %s465, 4
          %s467 = scalar_lea.vmem %s8, %s466
        $region60: #{tpu_custom_call.1} parent=31 // pred_fallthru
          _
        // Predicated region
        $region61: #{tpu_custom_call.1} parent=31 // pred_check
          %p468 = pneg %p287
        $region62: #{tpu_custom_call.1} parent=31 // pred_check_branch
          %470 = sbr.rel (%p468) target = $region64
        $region63: #{tpu_custom_call.1} parent=31 // pred_region
          %p471 = scmp.lt.s32.totalorder %s29, 1
          %s472 = scalar_select %p471, %s29, 1
          %s473 = scalar_lea.vmem %s9, %s472
        $region64: #{tpu_custom_call.1} parent=31 // pred_fallthru
          _
      $region32: #{tpu_custom_call.1} parent=5 // pred_fallthru
        _
      %p474 = scmp.le.s32.totalorder 1, %s21
      %p475 = scmp.lt.s32.totalorder %s21, 3
      %p476 = pnand %p474, %p475
      %p477 = pneg %p476
      // Predicated region
      $region65: #{tpu_custom_call.1} parent=5 // pred_check
        _
      $region66: #{tpu_custom_call.1} parent=5 // pred_check_branch
        %479 = sbr.rel (%p476) target = $region68
      $region67: #{tpu_custom_call.1} parent=5 // pred_region
        %s480 = ssub.s32 %s21, 1
        // Predicated region
        $region69: #{tpu_custom_call.1} parent=67 // pred_check
          %p481 = pneg %p59
        $region70: #{tpu_custom_call.1} parent=67 // pred_check_branch
          %483 = sbr.rel (%p481) target = $region72
        $region71: #{tpu_custom_call.1} parent=67 // pred_region
          %484 = dma.done [#allocation5], 256
        $region72: #{tpu_custom_call.1} parent=67 // pred_fallthru
          _
        // Predicated region
        $region73: #{tpu_custom_call.1} parent=67 // pred_check
          %p485 = pneg %p85
        $region74: #{tpu_custom_call.1} parent=67 // pred_check_branch
          %487 = sbr.rel (%p485) target = $region76
        $region75: #{tpu_custom_call.1} parent=67 // pred_region
          %488 = dma.done [#allocation8], 256
        $region76: #{tpu_custom_call.1} parent=67 // pred_fallthru
          _
        %p489 = pneg %p59
        %p490 = pneg %p56
        %p491 = pneg %p85
        %p492 = pneg %p82
        %p493 = scmp.lt.s32.totalorder %s31, 1
        %s494 = scalar_select %p493, %s31, 1
        %s495 = scalar_lea.vmem %s2, %s494
        %p496 = pneg %p111
        %p497 = pneg %p108
        %p498 = scmp.lt.s32.totalorder %s31, 1
        %s499 = scalar_select %p498, %s31, 1
        %s500 = scalar_lea.vmem %s3, %s499
        %p501 = pneg %p137
        %p502 = pneg %p134
        %p503 = scmp.lt.s32.totalorder %s31, 1
        %s504 = scalar_select %p503, %s31, 1
        %s505 = smul.addr %s504, 4
        %s506 = smul.addr %s505, 4
        %s507 = scalar_lea.vmem %s4, %s506
        %p508 = pneg %p163
        %p509 = pneg %p160
        %p510 = scmp.lt.s32.totalorder %s31, 1
        %s511 = scalar_select %p510, %s31, 1
        %s512 = smul.addr %s511, 4
        %s513 = smul.addr %s512, 4
        %s514 = scalar_lea.vmem %s5, %s513
        %p515 = pneg %p189
        %p516 = pneg %p186
        %p517 = scmp.lt.s32.totalorder %s31, 1
        %s518 = scalar_select %p517, %s31, 1
        %s519 = smul.addr %s518, 4
        %s520 = smul.addr %s519, 4
        %s521 = scalar_lea.vmem %s6, %s520
        %p522 = pneg %p215
        %p523 = pneg %p212
        %p524 = scmp.lt.s32.totalorder %s31, 1
        %s525 = scalar_select %p524, %s31, 1
        %s526 = scalar_lea.vmem %s7, %s525
        %p527 = pneg %p241
        %p528 = pneg %p238
        %p529 = scmp.lt.s32.totalorder %s31, 1
        %s530 = scalar_select %p529, %s31, 1
        %s531 = smul.addr %s530, 8
        %s532 = smul.addr %s531, 4
        %s533 = scalar_lea.vmem %s8, %s532
        %p534 = pneg %p267
        %p535 = pneg %p264
        %p536 = scmp.lt.s32.totalorder %s31, 1
        %s537 = scalar_select %p536, %s31, 1
        %s538 = scalar_lea.vmem %s9, %s537
        %p539 = pneg %p293
        %p540 = pneg %p290
        %p541 = pneg %p314
        %p542 = pneg %p311
        %p543 = pneg %p335
        %p544 = pneg %p332
        %p545 = pneg %p361
        %p546 = pneg %p358
        %s547 = smul.u32 2, %s30
        %s548 = smul.u32 2, %s30
        %p549 = scmp.lt.s32.totalorder %s31, 1
        %s550 = scalar_select %p549, %s31, 1
        %s551 = scalar_lea.vmem %s2, %s550
        %p552 = scmp.lt.s32.totalorder %s31, 1
        %s553 = scalar_select %p552, %s31, 1
        %s554 = scalar_lea.vmem %s3, %s553
        %p555 = scmp.lt.s32.totalorder %s31, 1
        %s556 = scalar_select %p555, %s31, 1
        %s557 = smul.addr %s556, 4
        %s558 = smul.addr %s557, 4
        %s559 = scalar_lea.vmem %s4, %s558
        %p560 = scmp.lt.s32.totalorder %s31, 1
        %s561 = scalar_select %p560, %s31, 1
        %s562 = smul.addr %s561, 4
        %s563 = smul.addr %s562, 4
        %s564 = scalar_lea.vmem %s5, %s563
        %p565 = scmp.lt.s32.totalorder %s31, 1
        %s566 = scalar_select %p565, %s31, 1
        %s567 = smul.addr %s566, 4
        %s568 = smul.addr %s567, 4
        %s569 = scalar_lea.vmem %s6, %s568
        %p570 = scmp.lt.s32.totalorder %s31, 1
        %s571 = scalar_select %p570, %s31, 1
        %s572 = scalar_lea.vmem %s7, %s571
        %p573 = scmp.lt.s32.totalorder %s31, 1
        %s574 = scalar_select %p573, %s31, 1
        %s575 = smul.addr %s574, 8
        %s576 = smul.addr %s575, 4
        %s577 = scalar_lea.vmem %s8, %s576
        %p578 = scmp.lt.s32.totalorder %s31, 1
        %s579 = scalar_select %p578, %s31, 1
        %s580 = scalar_lea.vmem %s9, %s579
        %s581 = smul.u32 2, %s30
        %p583 = scmp.eq.s32.totalorder %s31, 0
        // Predicated region
        $region77: #{tpu_custom_call.1} parent=67 // pred_check
          %p584 = pneg %p583
        $region78: #{tpu_custom_call.1} parent=67 // pred_check_branch
          %586 = sbr.rel (%p584) target = $region80
        $region79: #{tpu_custom_call.1} parent=67 // pred_region
          %v587 = vld [vmem:[#allocation4] sm:$0xff]
          %v588 = vld [vmem:[#allocation4 + $0x8] sm:$0xff]
          %vm589 = vcmask 261120
          %590 = vst.msk [vmem:[#allocation9] sm:$0xff] %vm589, %v587
          %591 = vst.msk [vmem:[#allocation9 + $0x8] sm:$0xff] %vm589, %v588
        $region80: #{tpu_custom_call.1} parent=67 // pred_fallthru
          _
        %v592 = vld [vmem:[#allocation9] sm:$0xff]
        %v593 = vld [vmem:[#allocation9 + $0x8] sm:$0xff]
        %v594 = vld [vmem:[%s551] sm:$0x1]
        %v595 = vld [vmem:[%s554] sm:$0x1]
        %vm596 = vcmask 261120
        %v597 = vsel %vm596, %v592, 0.0
        %598 = vadd.xlane.f32.xlu0 %v597
        %v599 = vpop.xlane.xlu0 %598
        %v600 = vsel %vm596, %v593, 0.0
        %601 = vadd.xlane.f32.xlu0 %v600
        %v602 = vpop.xlane.xlu0 %601
        %v603 = vrcp.pop 32.0
        %v604 = vmul.f32 %v599, %v603
        %v605 = vmul.f32 %v602, %v603
        %v606 = vsub.f32 %v592, %v604
        %v607 = vsub.f32 %v593, %v605
        %v608 = vmul.f32 %v606, %v606
        %v609 = vmul.f32 %v607, %v607
        %v610 = vsel %vm596, %v608, 0.0
        %611 = vadd.xlane.f32.xlu0 %v610
        %v612 = vpop.xlane.xlu0 %611
        %v613 = vsel %vm596, %v609, 0.0
        %614 = vadd.xlane.f32.xlu0 %v613
        %v615 = vpop.xlane.xlu0 %614
        %v616 = vmul.f32 %v612, %v603
        %v617 = vmul.f32 %v615, %v603
        %v618 = vadd.f32 %v616, 1e-05
        %v619 = vadd.f32 %v617, 1e-05
        %v620 = vrsqrt.pop %v618
        %v621 = vrsqrt.pop %v619
        %v622 = vmul.f32 %v606, %v620
        %v623 = vmul.f32 %v607, %v621
        %v625 = vlaneseq
        %v626 = vshrl.u32 %v625, 7
        %v627 = vsub.s32 0, %v626
        %v628 = vrot.slane %v594, %v627
        %v630 = vmul.f32 %v622, %v628
        %v631 = vmul.f32 %v623, %v628
        %v633 = vlaneseq
        %v634 = vshrl.u32 %v633, 7
        %v635 = vsub.s32 0, %v634
        %v636 = vrot.slane %v595, %v635
        %v638 = vadd.f32 %v630, %v636
        %v639 = vadd.f32 %v631, %v636
        %v640 = vpack.c.bf16 %v639, %v638
        %v641 = vld [vmem:[%s559] sm:$0xf]
        %v642 = vld [vmem:[%s559 + $0x4] sm:$0xf]
        %v643 = vld [vmem:[%s559 + $0x8] sm:$0xf]
        %v644 = vld [vmem:[%s559 + $0xc] sm:$0xf]
        %v649 = vunpack.c.l.b16 %v641
        %v650 = vunpack.c.l.b16 %v642
        %v651 = vunpack.c.l.b16 %v643
        %v652 = vunpack.c.l.b16 %v644
        %v653 = vpack.c.b16 %v650, %v649
        %v654 = vpack.c.b16 %v652, %v651
        %v658 = vsel %vm596, %v640, 0
        %660 = vmatprep.subr.bf16.mxu0 0
        %661 = vmatpush1.bf16.msra.mxu0 %v653
        %662 = vmatprep.subr.bf16.mxu0 0
        %663 = vmatpush1.bf16.msra.mxu0 %v654
        %664 = vmatprep.subr.bf16.mxu0 0
        %665 = vmatpush1.bf16.msra.mxu0 0
        %666 = vmatprep.subr.bf16.mxu0 0
        %667 = vmatpush1.bf16.msra.mxu0 0
        %668 = vmatprep.subr.bf16.mxu0 0
        %669 = vmatpush1.bf16.msra.mxu0 0
        %670 = vmatprep.subr.bf16.mxu0 0
        %671 = vmatpush1.bf16.msra.mxu0 0
        %672 = vmatprep.subr.bf16.mxu0 0
        %673 = vmatpush1.bf16.msra.mxu0 0
        %674 = vmatprep.subr.bf16.mxu0 0
        %675 = vmatpush1.bf16.msra.mxu0 0
        %676 = vmatprep.subr.bf16.mxu0 0
        %677 = vmatpush1.bf16.msra.mxu0 0
        %678 = vmatprep.subr.bf16.mxu0 0
        %679 = vmatpush1.bf16.msra.mxu0 0
        %680 = vmatprep.subr.bf16.mxu0 0
        %681 = vmatpush1.bf16.msra.mxu0 0
        %682 = vmatprep.subr.bf16.mxu0 0
        %683 = vmatpush1.bf16.msra.mxu0 0
        %684 = vmatprep.subr.bf16.mxu0 0
        %685 = vmatpush1.bf16.msra.mxu0 0
        %686 = vmatprep.subr.bf16.mxu0 0
        %687 = vmatpush1.bf16.msra.mxu0 0
        %688 = vmatprep.subr.bf16.mxu0 0
        %689 = vmatpush1.bf16.msra.mxu0 0
        %690 = vmatprep.subr.bf16.mxu0 0
        %691 = vmatpush1.bf16.msra.mxu0 0
        %692 = vmatprep.mubr.bf16.mxu0 0
        %693 = vmatmul.mubr.bf16.gmra.mrb[0].mxu0 %v658
        %v694 = vpop.f32.mrb[0].mxu0
        %v695 = vadd.f32 0.0, %v694
        %v696 = vpop.f32.mrb[0].mxu0
        %v697 = vpop.f32.mrb[0].mxu0
        %v698 = vadd.f32 0.0, %v697
        %v699 = vpop.f32.mrb[0].mxu0
        %700 = vdwg.mxu0
        %vm701 = vcmask 785408
        %702 = vst.msk [vmem:[#allocation2] sm:$0xff] %vm701, %v695
        %703 = vst.msk [vmem:[#allocation2 + $0x8] sm:$0xff] %vm701, %v698
        %v704 = vld [vmem:[#allocation7] sm:$0xff]
        %v705 = vld [vmem:[#allocation7 + $0x8] sm:$0xff]
        %v706 = vld [vmem:[#allocation2] sm:$0xff]
        %v707 = vld [vmem:[#allocation2 + $0x8] sm:$0xff]
        %v708 = vpack.c.bf16 %v706, %v706
        %v709 = vpack.c.bf16 %v707, %v707
        %711 = vrot.lane.b32.xlu0 %v708, 96
        %v712 = vpop.permute.xlu0 %711
        %vm713 = vcmask 64512
        %v715 = vsel %vm713, %v708, 0
        %v718 = vsel %vm713, %v712, 0
        %720 = vmatprep.subr.bf16.mxu0 0
        %721 = vmatpush1.bf16.xpose.msra.mxu0 %v718
        %722 = vmatprep.subr.bf16.mxu0 0
        %723 = vmatpush1.bf16.xpose.msra.mxu0 0
        %724 = vmatprep.subr.bf16.mxu0 0
        %725 = vmatpush1.bf16.xpose.msra.mxu0 0
        %726 = vmatprep.subr.bf16.mxu0 0
        %727 = vmatpush1.bf16.xpose.msra.mxu0 0
        %728 = vmatprep.subr.bf16.mxu0 0
        %729 = vmatpush1.bf16.xpose.msra.mxu0 0
        %730 = vmatprep.subr.bf16.mxu0 0
        %731 = vmatpush1.bf16.xpose.msra.mxu0 0
        %732 = vmatprep.subr.bf16.mxu0 0
        %733 = vmatpush1.bf16.xpose.msra.mxu0 0
        %734 = vmatprep.subr.bf16.mxu0 0
        %735 = vmatpush1.bf16.xpose.msra.mxu0 0
        %736 = vmatprep.subr.bf16.mxu0 0
        %737 = vmatpush1.bf16.xpose.msra.mxu0 0
        %738 = vmatprep.subr.bf16.mxu0 0
        %739 = vmatpush1.bf16.xpose.msra.mxu0 0
        %740 = vmatprep.subr.bf16.mxu0 0
        %741 = vmatpush1.bf16.xpose.msra.mxu0 0
        %742 = vmatprep.subr.bf16.mxu0 0
        %743 = vmatpush1.bf16.xpose.msra.mxu0 0
        %744 = vmatprep.subr.bf16.mxu0 0
        %745 = vmatpush1.bf16.xpose.msra.mxu0 0
        %746 = vmatprep.subr.bf16.mxu0 0
        %747 = vmatpush1.bf16.xpose.msra.mxu0 0
        %748 = vmatprep.subr.bf16.mxu0 0
        %749 = vmatpush1.bf16.xpose.msra.mxu0 0
        %750 = vmatprep.subr.bf16.mxu0 0
        %751 = vmatpush1.bf16.xpose.msra.mxu0 0
        %752 = vmatprep.mubr.bf16.mxu0 0
        %753 = vmatmul.mubr.bf16.gmra.mrb[0].mxu0 %v715
        %v754 = vpop.f32.mrb[0].mxu0
        %v755 = vadd.f32 %v704, %v754
        %v756 = vpop.f32.mrb[0].mxu0
        %v757 = vpop.f32.mrb[0].mxu0
        %v758 = vpop.f32.mrb[0].mxu0
        %759 = vdwg.mxu0
        %761 = vrot.lane.b32.xlu0 %v709, 96
        %v762 = vpop.permute.xlu0 %761
        %v764 = vsel %vm713, %v709, 0
        %v767 = vsel %vm713, %v762, 0
        %769 = vmatprep.subr.bf16.mxu0 0
        %770 = vmatpush1.bf16.xpose.msra.mxu0 %v767
        %771 = vmatprep.subr.bf16.mxu0 0
        %772 = vmatpush1.bf16.xpose.msra.mxu0 0
        %773 = vmatprep.subr.bf16.mxu0 0
        %774 = vmatpush1.bf16.xpose.msra.mxu0 0
        %775 = vmatprep.subr.bf16.mxu0 0
        %776 = vmatpush1.bf16.xpose.msra.mxu0 0
        %777 = vmatprep.subr.bf16.mxu0 0
        %778 = vmatpush1.bf16.xpose.msra.mxu0 0
        %779 = vmatprep.subr.bf16.mxu0 0
        %780 = vmatpush1.bf16.xpose.msra.mxu0 0
        %781 = vmatprep.subr.bf16.mxu0 0
        %782 = vmatpush1.bf16.xpose.msra.mxu0 0
        %783 = vmatprep.subr.bf16.mxu0 0
        %784 = vmatpush1.bf16.xpose.msra.mxu0 0
        %785 = vmatprep.subr.bf16.mxu0 0
        %786 = vmatpush1.bf16.xpose.msra.mxu0 0
        %787 = vmatprep.subr.bf16.mxu0 0
        %788 = vmatpush1.bf16.xpose.msra.mxu0 0
        %789 = vmatprep.subr.bf16.mxu0 0
        %790 = vmatpush1.bf16.xpose.msra.mxu0 0
        %791 = vmatprep.subr.bf16.mxu0 0
        %792 = vmatpush1.bf16.xpose.msra.mxu0 0
        %793 = vmatprep.subr.bf16.mxu0 0
        %794 = vmatpush1.bf16.xpose.msra.mxu0 0
        %795 = vmatprep.subr.bf16.mxu0 0
        %796 = vmatpush1.bf16.xpose.msra.mxu0 0
        %797 = vmatprep.subr.bf16.mxu0 0
        %798 = vmatpush1.bf16.xpose.msra.mxu0 0
        %799 = vmatprep.subr.bf16.mxu0 0
        %800 = vmatpush1.bf16.xpose.msra.mxu0 0
        %801 = vmatprep.mubr.bf16.mxu0 0
        %802 = vmatmul.mubr.bf16.gmra.mrb[0].mxu0 %v764
        %v803 = vpop.f32.mrb[0].mxu0
        %v804 = vadd.f32 %v705, %v803
        %v805 = vpop.f32.mrb[0].mxu0
        %v806 = vpop.f32.mrb[0].mxu0
        %v807 = vpop.f32.mrb[0].mxu0
        %808 = vdwg.mxu0
        %v809 = vsel %vm713, %v755, -inf
        %810 = vmax.xlane.f32.xlu0 %v809
        %v811 = vpop.xlane.xlu0 %810
        %v812 = vsel %vm713, %v804, -inf
        %813 = vmax.xlane.f32.xlu0 %v812
        %v814 = vpop.xlane.xlu0 %813
        %v815 = vsub.f32 %v755, %v811
        %v816 = vsub.f32 %v804, %v814
        %v817 = vmul.f32 %v815, 1.442695
        %v818 = vpow.pop %v817
        %v819 = vmul.f32 %v816, 1.442695
        %v820 = vpow.pop %v819
        %v821 = vsel %vm713, %v818, 0.0
        %822 = vadd.xlane.f32.xlu0 %v821
        %v823 = vpop.xlane.xlu0 %822
        %v824 = vsel %vm713, %v820, 0.0
        %825 = vadd.xlane.f32.xlu0 %v824
        %v826 = vpop.xlane.xlu0 %825
        %v827 = vrcp.pop %v823
        %v828 = vrcp.pop %v826
        %v829 = vmul.f32 %v818, %v827
        %v830 = vmul.f32 %v820, %v828
        %v831 = vpack.c.bf16 %v829, %v829
        %v832 = vpack.c.bf16 %v830, %v830
        %833 = vrot.lane.b32.xlu0 %v708, 64
        %v834 = vpop.permute.xlu0 %833
        %v836 = vsel %vm713, %v831, 0
        %vm838 = vcmask 1043456
        %v840 = vsel %vm838, %v834, 0
        %842 = vmatprep.subr.bf16.mxu0 0
        %843 = vmatpush1.bf16.msra.mxu0 %v840
        %844 = vmatprep.subr.bf16.mxu0 0
        %845 = vmatpush1.bf16.msra.mxu0 0
        %846 = vmatprep.subr.bf16.mxu0 0
        %847 = vmatpush1.bf16.msra.mxu0 0
        %848 = vmatprep.subr.bf16.mxu0 0
        %849 = vmatpush1.bf16.msra.mxu0 0
        %850 = vmatprep.subr.bf16.mxu0 0
        %851 = vmatpush1.bf16.msra.mxu0 0
        %852 = vmatprep.subr.bf16.mxu0 0
        %853 = vmatpush1.bf16.msra.mxu0 0
        %854 = vmatprep.subr.bf16.mxu0 0
        %855 = vmatpush1.bf16.msra.mxu0 0
        %856 = vmatprep.subr.bf16.mxu0 0
        %857 = vmatpush1.bf16.msra.mxu0 0
        %858 = vmatprep.subr.bf16.mxu0 0
        %859 = vmatpush1.bf16.msra.mxu0 0
        %860 = vmatprep.subr.bf16.mxu0 0
        %861 = vmatpush1.bf16.msra.mxu0 0
        %862 = vmatprep.subr.bf16.mxu0 0
        %863 = vmatpush1.bf16.msra.mxu0 0
        %864 = vmatprep.subr.bf16.mxu0 0
        %865 = vmatpush1.bf16.msra.mxu0 0
        %866 = vmatprep.subr.bf16.mxu0 0
        %867 = vmatpush1.bf16.msra.mxu0 0
        %868 = vmatprep.subr.bf16.mxu0 0
        %869 = vmatpush1.bf16.msra.mxu0 0
        %870 = vmatprep.subr.bf16.mxu0 0
        %871 = vmatpush1.bf16.msra.mxu0 0
        %872 = vmatprep.subr.bf16.mxu0 0
        %873 = vmatpush1.bf16.msra.mxu0 0
        %874 = vmatprep.mubr.bf16.mxu0 0
        %875 = vmatmul.mubr.bf16.gmra.mrb[0].mxu0 %v836
        %v876 = vpop.f32.mrb[0].mxu0
        %v877 = vadd.f32 0.0, %v876
        %v878 = vpop.f32.mrb[0].mxu0
        %v879 = vpop.f32.mrb[0].mxu0
        %v880 = vpop.f32.mrb[0].mxu0
        %881 = vdwg.mxu0
        %882 = vrot.lane.b32.xlu0 %v709, 64
        %v883 = vpop.permute.xlu0 %882
        %v885 = vsel %vm713, %v832, 0
        %v888 = vsel %vm838, %v883, 0
        %890 = vmatprep.subr.bf16.mxu0 0
        %891 = vmatpush1.bf16.msra.mxu0 %v888
        %892 = vmatprep.subr.bf16.mxu0 0
        %893 = vmatpush1.bf16.msra.mxu0 0
        %894 = vmatprep.subr.bf16.mxu0 0
        %895 = vmatpush1.bf16.msra.mxu0 0
        %896 = vmatprep.subr.bf16.mxu0 0
        %897 = vmatpush1.bf16.msra.mxu0 0
        %898 = vmatprep.subr.bf16.mxu0 0
        %899 = vmatpush1.bf16.msra.mxu0 0
        %900 = vmatprep.subr.bf16.mxu0 0
        %901 = vmatpush1.bf16.msra.mxu0 0
        %902 = vmatprep.subr.bf16.mxu0 0
        %903 = vmatpush1.bf16.msra.mxu0 0
        %904 = vmatprep.subr.bf16.mxu0 0
        %905 = vmatpush1.bf16.msra.mxu0 0
        %906 = vmatprep.subr.bf16.mxu0 0
        %907 = vmatpush1.bf16.msra.mxu0 0
        %908 = vmatprep.subr.bf16.mxu0 0
        %909 = vmatpush1.bf16.msra.mxu0 0
        %910 = vmatprep.subr.bf16.mxu0 0
        %911 = vmatpush1.bf16.msra.mxu0 0
        %912 = vmatprep.subr.bf16.mxu0 0
        %913 = vmatpush1.bf16.msra.mxu0 0
        %914 = vmatprep.subr.bf16.mxu0 0
        %915 = vmatpush1.bf16.msra.mxu0 0
        %916 = vmatprep.subr.bf16.mxu0 0
        %917 = vmatpush1.bf16.msra.mxu0 0
        %918 = vmatprep.subr.bf16.mxu0 0
        %919 = vmatpush1.bf16.msra.mxu0 0
        %920 = vmatprep.subr.bf16.mxu0 0
        %921 = vmatpush1.bf16.msra.mxu0 0
        %922 = vmatprep.mubr.bf16.mxu0 0
        %923 = vmatmul.mubr.bf16.gmra.mrb[0].mxu0 %v885
        %v924 = vpop.f32.mrb[0].mxu0
        %v925 = vadd.f32 0.0, %v924
        %v926 = vpop.f32.mrb[0].mxu0
        %v927 = vpop.f32.mrb[0].mxu0
        %v928 = vpop.f32.mrb[0].mxu0
        %929 = vdwg.mxu0
        %930 = vst.msk [vmem:[#allocation3] sm:$0xff] %vm713, %v877
        %931 = vst.msk [vmem:[#allocation3 + $0x8] sm:$0xff] %vm713, %v925
        %v932 = vld [vmem:[#allocation2] sm:$0xff]
        %v933 = vld [vmem:[#allocation2 + $0x8] sm:$0xff]
        %v934 = vpack.c.bf16 %v932, %v932
        %v935 = vpack.c.bf16 %v933, %v933
        %937 = vrot.lane.b32.xlu0 %v934, 120
        %v938 = vpop.permute.xlu0 %937
        %939 = vrot.lane.b32.xlu0 %v934, 88
        %v940 = vpop.permute.xlu0 %939
        %v942 = vsel %vm713, %v938, 0
        %v945 = vsel %vm713, %v940, 0
        %947 = vmatprep.subr.bf16.mxu0 0
        %948 = vmatpush1.bf16.xpose.msra.mxu0 %v945
        %949 = vmatprep.subr.bf16.mxu0 0
        %950 = vmatpush1.bf16.xpose.msra.mxu0 0
        %951 = vmatprep.subr.bf16.mxu0 0
        %952 = vmatpush1.bf16.xpose.msra.mxu0 0
        %953 = vmatprep.subr.bf16.mxu0 0
        %954 = vmatpush1.bf16.xpose.msra.mxu0 0
        %955 = vmatprep.subr.bf16.mxu0 0
        %956 = vmatpush1.bf16.xpose.msra.mxu0 0
        %957 = vmatprep.subr.bf16.mxu0 0
        %958 = vmatpush1.bf16.xpose.msra.mxu0 0
        %959 = vmatprep.subr.bf16.mxu0 0
        %960 = vmatpush1.bf16.xpose.msra.mxu0 0
        %961 = vmatprep.subr.bf16.mxu0 0
        %962 = vmatpush1.bf16.xpose.msra.mxu0 0
        %963 = vmatprep.subr.bf16.mxu0 0
        %964 = vmatpush1.bf16.xpose.msra.mxu0 0
        %965 = vmatprep.subr.bf16.mxu0 0
        %966 = vmatpush1.bf16.xpose.msra.mxu0 0
        %967 = vmatprep.subr.bf16.mxu0 0
        %968 = vmatpush1.bf16.xpose.msra.mxu0 0
        %969 = vmatprep.subr.bf16.mxu0 0
        %970 = vmatpush1.bf16.xpose.msra.mxu0 0
        %971 = vmatprep.subr.bf16.mxu0 0
        %972 = vmatpush1.bf16.xpose.msra.mxu0 0
        %973 = vmatprep.subr.bf16.mxu0 0
        %974 = vmatpush1.bf16.xpose.msra.mxu0 0
        %975 = vmatprep.subr.bf16.mxu0 0
        %976 = vmatpush1.bf16.xpose.msra.mxu0 0
        %977 = vmatprep.subr.bf16.mxu0 0
        %978 = vmatpush1.bf16.xpose.msra.mxu0 0
        %979 = vmatprep.mubr.bf16.mxu0 0
        %980 = vmatmul.mubr.bf16.gmra.mrb[0].mxu0 %v942
        %v981 = vpop.f32.mrb[0].mxu0
        %v982 = vadd.f32 %v704, %v981
        %v983 = vpop.f32.mrb[0].mxu0
        %v984 = vpop.f32.mrb[0].mxu0
        %v985 = vpop.f32.mrb[0].mxu0
        %986 = vdwg.mxu0
        %988 = vrot.lane.b32.xlu0 %v935, 120
        %v989 = vpop.permute.xlu0 %988
        %990 = vrot.lane.b32.xlu0 %v935, 88
        %v991 = vpop.permute.xlu0 %990
        %v993 = vsel %vm713, %v989, 0
        %v996 = vsel %vm713, %v991, 0
        %998 = vmatprep.subr.bf16.mxu0 0
        %999 = vmatpush1.bf16.xpose.msra.mxu0 %v996
        %1000 = vmatprep.subr.bf16.mxu0 0
        %1001 = vmatpush1.bf16.xpose.msra.mxu0 0
        %1002 = vmatprep.subr.bf16.mxu0 0
        %1003 = vmatpush1.bf16.xpose.msra.mxu0 0
        %1004 = vmatprep.subr.bf16.mxu0 0
        %1005 = vmatpush1.bf16.xpose.msra.mxu0 0
        %1006 = vmatprep.subr.bf16.mxu0 0
        %1007 = vmatpush1.bf16.xpose.msra.mxu0 0
        %1008 = vmatprep.subr.bf16.mxu0 0
        %1009 = vmatpush1.bf16.xpose.msra.mxu0 0
        %1010 = vmatprep.subr.bf16.mxu0 0
        %1011 = vmatpush1.bf16.xpose.msra.mxu0 0
        %1012 = vmatprep.subr.bf16.mxu0 0
        %1013 = vmatpush1.bf16.xpose.msra.mxu0 0
        %1014 = vmatprep.subr.bf16.mxu0 0
        %1015 = vmatpush1.bf16.xpose.msra.mxu0 0
        %1016 = vmatprep.subr.bf16.mxu0 0
        %1017 = vmatpush1.bf16.xpose.msra.mxu0 0
        %1018 = vmatprep.subr.bf16.mxu0 0
        %1019 = vmatpush1.bf16.xpose.msra.mxu0 0
        %1020 = vmatprep.subr.bf16.mxu0 0
        %1021 = vmatpush1.bf16.xpose.msra.mxu0 0
        %1022 = vmatprep.subr.bf16.mxu0 0
        %1023 = vmatpush1.bf16.xpose.msra.mxu0 0
        %1024 = vmatprep.subr.bf16.mxu0 0
        %1025 = vmatpush1.bf16.xpose.msra.mxu0 0
        %1026 = vmatprep.subr.bf16.mxu0 0
        %1027 = vmatpush1.bf16.xpose.msra.mxu0 0
        %1028 = vmatprep.subr.bf16.mxu0 0
        %1029 = vmatpush1.bf16.xpose.msra.mxu0 0
        %1030 = vmatprep.mubr.bf16.mxu0 0
        %1031 = vmatmul.mubr.bf16.gmra.mrb[0].mxu0 %v993
        %v1032 = vpop.f32.mrb[0].mxu0
        %v1033 = vadd.f32 %v705, %v1032
        %v1034 = vpop.f32.mrb[0].mxu0
        %v1035 = vpop.f32.mrb[0].mxu0
        %v1036 = vpop.f32.mrb[0].mxu0
        %1037 = vdwg.mxu0
        %v1038 = vsel %vm713, %v982, -inf
        %1039 = vmax.xlane.f32.xlu0 %v1038
        %v1040 = vpop.xlane.xlu0 %1039
        %v1041 = vsel %vm713, %v1033, -inf
        %1042 = vmax.xlane.f32.xlu0 %v1041
        %v1043 = vpop.xlane.xlu0 %1042
        %v1044 = vsub.f32 %v982, %v1040
        %v1045 = vsub.f32 %v1033, %v1043
        %v1046 = vmul.f32 %v1044, 1.442695
        %v1047 = vpow.pop %v1046
        %v1048 = vmul.f32 %v1045, 1.442695
        %v1049 = vpow.pop %v1048
        %v1050 = vsel %vm713, %v1047, 0.0
        %1051 = vadd.xlane.f32.xlu0 %v1050
        %v1052 = vpop.xlane.xlu0 %1051
        %v1053 = vsel %vm713, %v1049, 0.0
        %1054 = vadd.xlane.f32.xlu0 %v1053
        %v1055 = vpop.xlane.xlu0 %1054
        %v1056 = vrcp.pop %v1052
        %v1057 = vrcp.pop %v1055
        %v1058 = vmul.f32 %v1047, %v1056
        %v1059 = vmul.f32 %v1049, %v1057
        %v1060 = vpack.c.bf16 %v1058, %v1058
        %v1061 = vpack.c.bf16 %v1059, %v1059
        %1062 = vrot.lane.b32.xlu0 %v934, 56
        %v1063 = vpop.permute.xlu0 %1062
        %v1065 = vsel %vm713, %v1060, 0
        %v1068 = vsel %vm838, %v1063, 0
        %1070 = vmatprep.subr.bf16.mxu0 0
        %1071 = vmatpush1.bf16.msra.mxu0 %v1068
        %1072 = vmatprep.subr.bf16.mxu0 0
        %1073 = vmatpush1.bf16.msra.mxu0 0
        %1074 = vmatprep.subr.bf16.mxu0 0
        %1075 = vmatpush1.bf16.msra.mxu0 0
        %1076 = vmatprep.subr.bf16.mxu0 0
        %1077 = vmatpush1.bf16.msra.mxu0 0
        %1078 = vmatprep.subr.bf16.mxu0 0
        %1079 = vmatpush1.bf16.msra.mxu0 0
        %1080 = vmatprep.subr.bf16.mxu0 0
        %1081 = vmatpush1.bf16.msra.mxu0 0
        %1082 = vmatprep.subr.bf16.mxu0 0
        %1083 = vmatpush1.bf16.msra.mxu0 0
        %1084 = vmatprep.subr.bf16.mxu0 0
        %1085 = vmatpush1.bf16.msra.mxu0 0
        %1086 = vmatprep.subr.bf16.mxu0 0
        %1087 = vmatpush1.bf16.msra.mxu0 0
        %1088 = vmatprep.subr.bf16.mxu0 0
        %1089 = vmatpush1.bf16.msra.mxu0 0
        %1090 = vmatprep.subr.bf16.mxu0 0
        %1091 = vmatpush1.bf16.msra.mxu0 0
        %1092 = vmatprep.subr.bf16.mxu0 0
        %1093 = vmatpush1.bf16.msra.mxu0 0
        %1094 = vmatprep.subr.bf16.mxu0 0
        %1095 = vmatpush1.bf16.msra.mxu0 0
        %1096 = vmatprep.subr.bf16.mxu0 0
        %1097 = vmatpush1.bf16.msra.mxu0 0
        %1098 = vmatprep.subr.bf16.mxu0 0
        %1099 = vmatpush1.bf16.msra.mxu0 0
        %1100 = vmatprep.subr.bf16.mxu0 0
        %1101 = vmatpush1.bf16.msra.mxu0 0
        %1102 = vmatprep.mubr.bf16.mxu0 0
        %1103 = vmatmul.mubr.bf16.gmra.mrb[0].mxu0 %v1065
        %v1104 = vpop.f32.mrb[0].mxu0
        %v1105 = vadd.f32 0.0, %v1104
        %v1106 = vpop.f32.mrb[0].mxu0
        %v1107 = vpop.f32.mrb[0].mxu0
        %v1108 = vpop.f32.mrb[0].mxu0
        %1109 = vdwg.mxu0
        %1110 = vrot.lane.b32.xlu0 %v935, 56
        %v1111 = vpop.permute.xlu0 %1110
        %v1113 = vsel %vm713, %v1061, 0
        %v1116 = vsel %vm838, %v1111, 0
        %1118 = vmatprep.subr.bf16.mxu0 0
        %1119 = vmatpush1.bf16.msra.mxu0 %v1116
        %1120 = vmatprep.subr.bf16.mxu0 0
        %1121 = vmatpush1.bf16.msra.mxu0 0
        %1122 = vmatprep.subr.bf16.mxu0 0
        %1123 = vmatpush1.bf16.msra.mxu0 0
        %1124 = vmatprep.subr.bf16.mxu0 0
        %1125 = vmatpush1.bf16.msra.mxu0 0
        %1126 = vmatprep.subr.bf16.mxu0 0
        %1127 = vmatpush1.bf16.msra.mxu0 0
        %1128 = vmatprep.subr.bf16.mxu0 0
        %1129 = vmatpush1.bf16.msra.mxu0 0
        %1130 = vmatprep.subr.bf16.mxu0 0
        %1131 = vmatpush1.bf16.msra.mxu0 0
        %1132 = vmatprep.subr.bf16.mxu0 0
        %1133 = vmatpush1.bf16.msra.mxu0 0
        %1134 = vmatprep.subr.bf16.mxu0 0
        %1135 = vmatpush1.bf16.msra.mxu0 0
        %1136 = vmatprep.subr.bf16.mxu0 0
        %1137 = vmatpush1.bf16.msra.mxu0 0
        %1138 = vmatprep.subr.bf16.mxu0 0
        %1139 = vmatpush1.bf16.msra.mxu0 0
        %1140 = vmatprep.subr.bf16.mxu0 0
        %1141 = vmatpush1.bf16.msra.mxu0 0
        %1142 = vmatprep.subr.bf16.mxu0 0
        %1143 = vmatpush1.bf16.msra.mxu0 0
        %1144 = vmatprep.subr.bf16.mxu0 0
        %1145 = vmatpush1.bf16.msra.mxu0 0
        %1146 = vmatprep.subr.bf16.mxu0 0
        %1147 = vmatpush1.bf16.msra.mxu0 0
        %1148 = vmatprep.subr.bf16.mxu0 0
        %1149 = vmatpush1.bf16.msra.mxu0 0
        %1150 = vmatprep.mubr.bf16.mxu0 0
        %1151 = vmatmul.mubr.bf16.gmra.mrb[0].mxu0 %v1113
        %v1152 = vpop.f32.mrb[0].mxu0
        %v1153 = vadd.f32 0.0, %v1152
        %v1154 = vpop.f32.mrb[0].mxu0
        %v1155 = vpop.f32.mrb[0].mxu0
        %v1156 = vpop.f32.mrb[0].mxu0
        %1157 = vdwg.mxu0
        %1160 = vrot.lane.b32.xlu0 %v1105, 8
        %v1161 = vpop.permute.xlu0 %1160
        %1162 = vrot.lane.b32.xlu0 %v1153, 8
        %v1163 = vpop.permute.xlu0 %1162
        %vm1166 = vcmask 130112
        %1167 = vst.msk [vmem:[#allocation3] sm:$0xff] %vm1166, %v1161
        %1168 = vst.msk [vmem:[#allocation3 + $0x8] sm:$0xff] %vm1166, %v1163
        %v1169 = vld [vmem:[#allocation2] sm:$0xff]
        %v1170 = vld [vmem:[#allocation2 + $0x8] sm:$0xff]
        %v1171 = vpack.c.bf16 %v1169, %v1169
        %v1172 = vpack.c.bf16 %v1170, %v1170
        %1174 = vrot.lane.b32.xlu0 %v1171, 112
        %v1175 = vpop.permute.xlu0 %1174
        %1176 = vrot.lane.b32.xlu0 %v1171, 80
        %v1177 = vpop.permute.xlu0 %1176
        %v1179 = vsel %vm713, %v1175, 0
        %v1182 = vsel %vm713, %v1177, 0
        %1184 = vmatprep.subr.bf16.mxu0 0
        %1185 = vmatpush1.bf16.xpose.msra.mxu0 %v1182
        %1186 = vmatprep.subr.bf16.mxu0 0
        %1187 = vmatpush1.bf16.xpose.msra.mxu0 0
        %1188 = vmatprep.subr.bf16.mxu0 0
        %1189 = vmatpush1.bf16.xpose.msra.mxu0 0
        %1190 = vmatprep.subr.bf16.mxu0 0
        %1191 = vmatpush1.bf16.xpose.msra.mxu0 0
        %1192 = vmatprep.subr.bf16.mxu0 0
        %1193 = vmatpush1.bf16.xpose.msra.mxu0 0
        %1194 = vmatprep.subr.bf16.mxu0 0
        %1195 = vmatpush1.bf16.xpose.msra.mxu0 0
        %1196 = vmatprep.subr.bf16.mxu0 0
        %1197 = vmatpush1.bf16.xpose.msra.mxu0 0
        %1198 = vmatprep.subr.bf16.mxu0 0
        %1199 = vmatpush1.bf16.xpose.msra.mxu0 0
        %1200 = vmatprep.subr.bf16.mxu0 0
        %1201 = vmatpush1.bf16.xpose.msra.mxu0 0
        %1202 = vmatprep.subr.bf16.mxu0 0
        %1203 = vmatpush1.bf16.xpose.msra.mxu0 0
        %1204 = vmatprep.subr.bf16.mxu0 0
        %1205 = vmatpush1.bf16.xpose.msra.mxu0 0
        %1206 = vmatprep.subr.bf16.mxu0 0
        %1207 = vmatpush1.bf16.xpose.msra.mxu0 0
        %1208 = vmatprep.subr.bf16.mxu0 0
        %1209 = vmatpush1.bf16.xpose.msra.mxu0 0
        %1210 = vmatprep.subr.bf16.mxu0 0
        %1211 = vmatpush1.bf16.xpose.msra.mxu0 0
        %1212 = vmatprep.subr.bf16.mxu0 0
        %1213 = vmatpush1.bf16.xpose.msra.mxu0 0
        %1214 = vmatprep.subr.bf16.mxu0 0
        %1215 = vmatpush1.bf16.xpose.msra.mxu0 0
        %1216 = vmatprep.mubr.bf16.mxu0 0
        %1217 = vmatmul.mubr.bf16.gmra.mrb[0].mxu0 %v1179
        %v1218 = vpop.f32.mrb[0].mxu0
        %v1219 = vadd.f32 %v704, %v1218
        %v1220 = vpop.f32.mrb[0].mxu0
        %v1221 = vpop.f32.mrb[0].mxu0
        %v1222 = vpop.f32.mrb[0].mxu0
        %1223 = vdwg.mxu0
        %1225 = vrot.lane.b32.xlu0 %v1172, 112
        %v1226 = vpop.permute.xlu0 %1225
        %1227 = vrot.lane.b32.xlu0 %v1172, 80
        %v1228 = vpop.permute.xlu0 %1227
        %v1230 = vsel %vm713, %v1226, 0
        %v1233 = vsel %vm713, %v1228, 0
        %1235 = vmatprep.subr.bf16.mxu0 0
        %1236 = vmatpush1.bf16.xpose.msra.mxu0 %v1233
        %1237 = vmatprep.subr.bf16.mxu0 0
        %1238 = vmatpush1.bf16.xpose.msra.mxu0 0
        %1239 = vmatprep.subr.bf16.mxu0 0
        %1240 = vmatpush1.bf16.xpose.msra.mxu0 0
        %1241 = vmatprep.subr.bf16.mxu0 0
        %1242 = vmatpush1.bf16.xpose.msra.mxu0 0
        %1243 = vmatprep.subr.bf16.mxu0 0
        %1244 = vmatpush1.bf16.xpose.msra.mxu0 0
        %1245 = vmatprep.subr.bf16.mxu0 0
        %1246 = vmatpush1.bf16.xpose.msra.mxu0 0
        %1247 = vmatprep.subr.bf16.mxu0 0
        %1248 = vmatpush1.bf16.xpose.msra.mxu0 0
        %1249 = vmatprep.subr.bf16.mxu0 0
        %1250 = vmatpush1.bf16.xpose.msra.mxu0 0
        %1251 = vmatprep.subr.bf16.mxu0 0
        %1252 = vmatpush1.bf16.xpose.msra.mxu0 0
        %1253 = vmatprep.subr.bf16.mxu0 0
        %1254 = vmatpush1.bf16.xpose.msra.mxu0 0
        %1255 = vmatprep.subr.bf16.mxu0 0
        %1256 = vmatpush1.bf16.xpose.msra.mxu0 0
        %1257 = vmatprep.subr.bf16.mxu0 0
        %1258 = vmatpush1.bf16.xpose.msra.mxu0 0
        %1259 = vmatprep.subr.bf16.mxu0 0
        %1260 = vmatpush1.bf16.xpose.msra.mxu0 0
        %1261 = vmatprep.subr.bf16.mxu0 0
        %1262 = vmatpush1.bf16.xpose.msra.mxu0 0
        %1263 = vmatprep.subr.bf16.mxu0 0
        %1264 = vmatpush1.bf16.xpose.msra.mxu0 0
        %1265 = vmatprep.subr.bf16.mxu0 0
        %1266 = vmatpush1.bf16.xpose.msra.mxu0 0
        %1267 = vmatprep.mubr.bf16.mxu0 0
        %1268 = vmatmul.mubr.bf16.gmra.mrb[0].mxu0 %v1230
        %v1269 = vpop.f32.mrb[0].mxu0
        %v1270 = vadd.f32 %v705, %v1269
        %v1271 = vpop.f32.mrb[0].mxu0
        %v1272 = vpop.f32.mrb[0].mxu0
        %v1273 = vpop.f32.mrb[0].mxu0
        %1274 = vdwg.mxu0
        %v1275 = vsel %vm713, %v1219, -inf
        %1276 = vmax.xlane.f32.xlu0 %v1275
        %v1277 = vpop.xlane.xlu0 %1276
        %v1278 = vsel %vm713, %v1270, -inf
        %1279 = vmax.xlane.f32.xlu0 %v1278
        %v1280 = vpop.xlane.xlu0 %1279
        %v1281 = vsub.f32 %v1219, %v1277
        %v1282 = vsub.f32 %v1270, %v1280
        %v1283 = vmul.f32 %v1281, 1.442695
        %v1284 = vpow.pop %v1283
        %v1285 = vmul.f32 %v1282, 1.442695
        %v1286 = vpow.pop %v1285
        %v1287 = vsel %vm713, %v1284, 0.0
        %1288 = vadd.xlane.f32.xlu0 %v1287
        %v1289 = vpop.xlane.xlu0 %1288
        %v1290 = vsel %vm713, %v1286, 0.0
        %1291 = vadd.xlane.f32.xlu0 %v1290
        %v1292 = vpop.xlane.xlu0 %1291
        %v1293 = vrcp.pop %v1289
        %v1294 = vrcp.pop %v1292
        %v1295 = vmul.f32 %v1284, %v1293
        %v1296 = vmul.f32 %v1286, %v1294
        %v1297 = vpack.c.bf16 %v1295, %v1295
        %v1298 = vpack.c.bf16 %v1296, %v1296
        %1299 = vrot.lane.b32.xlu0 %v1171, 48
        %v1300 = vpop.permute.xlu0 %1299
        %v1302 = vsel %vm713, %v1297, 0
        %v1305 = vsel %vm838, %v1300, 0
        %1307 = vmatprep.subr.bf16.mxu0 0
        %1308 = vmatpush1.bf16.msra.mxu0 %v1305
        %1309 = vmatprep.subr.bf16.mxu0 0
        %1310 = vmatpush1.bf16.msra.mxu0 0
        %1311 = vmatprep.subr.bf16.mxu0 0
        %1312 = vmatpush1.bf16.msra.mxu0 0
        %1313 = vmatprep.subr.bf16.mxu0 0
        %1314 = vmatpush1.bf16.msra.mxu0 0
        %1315 = vmatprep.subr.bf16.mxu0 0
        %1316 = vmatpush1.bf16.msra.mxu0 0
        %1317 = vmatprep.subr.bf16.mxu0 0
        %1318 = vmatpush1.bf16.msra.mxu0 0
        %1319 = vmatprep.subr.bf16.mxu0 0
        %1320 = vmatpush1.bf16.msra.mxu0 0
        %1321 = vmatprep.subr.bf16.mxu0 0
        %1322 = vmatpush1.bf16.msra.mxu0 0
        %1323 = vmatprep.subr.bf16.mxu0 0
        %1324 = vmatpush1.bf16.msra.mxu0 0
        %1325 = vmatprep.subr.bf16.mxu0 0
        %1326 = vmatpush1.bf16.msra.mxu0 0
        %1327 = vmatprep.subr.bf16.mxu0 0
        %1328 = vmatpush1.bf16.msra.mxu0 0
        %1329 = vmatprep.subr.bf16.mxu0 0
        %1330 = vmatpush1.bf16.msra.mxu0 0
        %1331 = vmatprep.subr.bf16.mxu0 0
        %1332 = vmatpush1.bf16.msra.mxu0 0
        %1333 = vmatprep.subr.bf16.mxu0 0
        %1334 = vmatpush1.bf16.msra.mxu0 0
        %1335 = vmatprep.subr.bf16.mxu0 0
        %1336 = vmatpush1.bf16.msra.mxu0 0
        %1337 = vmatprep.subr.bf16.mxu0 0
        %1338 = vmatpush1.bf16.msra.mxu0 0
        %1339 = vmatprep.mubr.bf16.mxu0 0
        %1340 = vmatmul.mubr.bf16.gmra.mrb[0].mxu0 %v1302
        %v1341 = vpop.f32.mrb[0].mxu0
        %v1342 = vadd.f32 0.0, %v1341
        %v1343 = vpop.f32.mrb[0].mxu0
        %v1344 = vpop.f32.mrb[0].mxu0
        %v1345 = vpop.f32.mrb[0].mxu0
        %1346 = vdwg.mxu0
        %1347 = vrot.lane.b32.xlu0 %v1172, 48
        %v1348 = vpop.permute.xlu0 %1347
        %v1350 = vsel %vm713, %v1298, 0
        %v1353 = vsel %vm838, %v1348, 0
        %1355 = vmatprep.subr.bf16.mxu0 0
        %1356 = vmatpush1.bf16.msra.mxu0 %v1353
        %1357 = vmatprep.subr.bf16.mxu0 0
        %1358 = vmatpush1.bf16.msra.mxu0 0
        %1359 = vmatprep.subr.bf16.mxu0 0
        %1360 = vmatpush1.bf16.msra.mxu0 0
        %1361 = vmatprep.subr.bf16.mxu0 0
        %1362 = vmatpush1.bf16.msra.mxu0 0
        %1363 = vmatprep.subr.bf16.mxu0 0
        %1364 = vmatpush1.bf16.msra.mxu0 0
        %1365 = vmatprep.subr.bf16.mxu0 0
        %1366 = vmatpush1.bf16.msra.mxu0 0
        %1367 = vmatprep.subr.bf16.mxu0 0
        %1368 = vmatpush1.bf16.msra.mxu0 0
        %1369 = vmatprep.subr.bf16.mxu0 0
        %1370 = vmatpush1.bf16.msra.mxu0 0
        %1371 = vmatprep.subr.bf16.mxu0 0
        %1372 = vmatpush1.bf16.msra.mxu0 0
        %1373 = vmatprep.subr.bf16.mxu0 0
        %1374 = vmatpush1.bf16.msra.mxu0 0
        %1375 = vmatprep.subr.bf16.mxu0 0
        %1376 = vmatpush1.bf16.msra.mxu0 0
        %1377 = vmatprep.subr.bf16.mxu0 0
        %1378 = vmatpush1.bf16.msra.mxu0 0
        %1379 = vmatprep.subr.bf16.mxu0 0
        %1380 = vmatpush1.bf16.msra.mxu0 0
        %1381 = vmatprep.subr.bf16.mxu0 0
        %1382 = vmatpush1.bf16.msra.mxu0 0
        %1383 = vmatprep.subr.bf16.mxu0 0
        %1384 = vmatpush1.bf16.msra.mxu0 0
        %1385 = vmatprep.subr.bf16.mxu0 0
        %1386 = vmatpush1.bf16.msra.mxu0 0
        %1387 = vmatprep.mubr.bf16.mxu0 0
        %1388 = vmatmul.mubr.bf16.gmra.mrb[0].mxu0 %v1350
        %v1389 = vpop.f32.mrb[0].mxu0
        %v1390 = vadd.f32 0.0, %v1389
        %v1391 = vpop.f32.mrb[0].mxu0
        %v1392 = vpop.f32.mrb[0].mxu0
        %v1393 = vpop.f32.mrb[0].mxu0
        %1394 = vdwg.mxu0
        %1397 = vrot.lane.b32.xlu0 %v1342, 16
        %v1398 = vpop.permute.xlu0 %1397
        %1399 = vrot.lane.b32.xlu0 %v1390, 16
        %v1400 = vpop.permute.xlu0 %1399
        %vm1403 = vcmask 195712
        %1404 = vst.msk [vmem:[#allocation3] sm:$0xff] %vm1403, %v1398
        %1405 = vst.msk [vmem:[#allocation3 + $0x8] sm:$0xff] %vm1403, %v1400
        %v1406 = vld [vmem:[#allocation2] sm:$0xff]
        %v1407 = vld [vmem:[#allocation2 + $0x8] sm:$0xff]
        %v1408 = vpack.c.bf16 %v1406, %v1406
        %v1409 = vpack.c.bf16 %v1407, %v1407
        %1411 = vrot.lane.b32.xlu0 %v1408, 104
        %v1412 = vpop.permute.xlu0 %1411
        %1413 = vrot.lane.b32.xlu0 %v1408, 72
        %v1414 = vpop.permute.xlu0 %1413
        %v1416 = vsel %vm713, %v1412, 0
        %v1419 = vsel %vm713, %v1414, 0
        %1421 = vmatprep.subr.bf16.mxu0 0
        %1422 = vmatpush1.bf16.xpose.msra.mxu0 %v1419
        %1423 = vmatprep.subr.bf16.mxu0 0
        %1424 = vmatpush1.bf16.xpose.msra.mxu0 0
        %1425 = vmatprep.subr.bf16.mxu0 0
        %1426 = vmatpush1.bf16.xpose.msra.mxu0 0
        %1427 = vmatprep.subr.bf16.mxu0 0
        %1428 = vmatpush1.bf16.xpose.msra.mxu0 0
        %1429 = vmatprep.subr.bf16.mxu0 0
        %1430 = vmatpush1.bf16.xpose.msra.mxu0 0
        %1431 = vmatprep.subr.bf16.mxu0 0
        %1432 = vmatpush1.bf16.xpose.msra.mxu0 0
        %1433 = vmatprep.subr.bf16.mxu0 0
        %1434 = vmatpush1.bf16.xpose.msra.mxu0 0
        %1435 = vmatprep.subr.bf16.mxu0 0
        %1436 = vmatpush1.bf16.xpose.msra.mxu0 0
        %1437 = vmatprep.subr.bf16.mxu0 0
        %1438 = vmatpush1.bf16.xpose.msra.mxu0 0
        %1439 = vmatprep.subr.bf16.mxu0 0
        %1440 = vmatpush1.bf16.xpose.msra.mxu0 0
        %1441 = vmatprep.subr.bf16.mxu0 0
        %1442 = vmatpush1.bf16.xpose.msra.mxu0 0
        %1443 = vmatprep.subr.bf16.mxu0 0
        %1444 = vmatpush1.bf16.xpose.msra.mxu0 0
        %1445 = vmatprep.subr.bf16.mxu0 0
        %1446 = vmatpush1.bf16.xpose.msra.mxu0 0
        %1447 = vmatprep.subr.bf16.mxu0 0
        %1448 = vmatpush1.bf16.xpose.msra.mxu0 0
        %1449 = vmatprep.subr.bf16.mxu0 0
        %1450 = vmatpush1.bf16.xpose.msra.mxu0 0
        %1451 = vmatprep.subr.bf16.mxu0 0
        %1452 = vmatpush1.bf16.xpose.msra.mxu0 0
        %1453 = vmatprep.mubr.bf16.mxu0 0
        %1454 = vmatmul.mubr.bf16.gmra.mrb[0].mxu0 %v1416
        %v1455 = vpop.f32.mrb[0].mxu0
        %v1456 = vadd.f32 %v704, %v1455
        %v1457 = vpop.f32.mrb[0].mxu0
        %v1458 = vpop.f32.mrb[0].mxu0
        %v1459 = vpop.f32.mrb[0].mxu0
        %1460 = vdwg.mxu0
        %1462 = vrot.lane.b32.xlu0 %v1409, 104
        %v1463 = vpop.permute.xlu0 %1462
        %1464 = vrot.lane.b32.xlu0 %v1409, 72
        %v1465 = vpop.permute.xlu0 %1464
        %v1467 = vsel %vm713, %v1463, 0
        %v1470 = vsel %vm713, %v1465, 0
        %1472 = vmatprep.subr.bf16.mxu0 0
        %1473 = vmatpush1.bf16.xpose.msra.mxu0 %v1470
        %1474 = vmatprep.subr.bf16.mxu0 0
        %1475 = vmatpush1.bf16.xpose.msra.mxu0 0
        %1476 = vmatprep.subr.bf16.mxu0 0
        %1477 = vmatpush1.bf16.xpose.msra.mxu0 0
        %1478 = vmatprep.subr.bf16.mxu0 0
        %1479 = vmatpush1.bf16.xpose.msra.mxu0 0
        %1480 = vmatprep.subr.bf16.mxu0 0
        %1481 = vmatpush1.bf16.xpose.msra.mxu0 0
        %1482 = vmatprep.subr.bf16.mxu0 0
        %1483 = vmatpush1.bf16.xpose.msra.mxu0 0
        %1484 = vmatprep.subr.bf16.mxu0 0
        %1485 = vmatpush1.bf16.xpose.msra.mxu0 0
        %1486 = vmatprep.subr.bf16.mxu0 0
        %1487 = vmatpush1.bf16.xpose.msra.mxu0 0
        %1488 = vmatprep.subr.bf16.mxu0 0
        %1489 = vmatpush1.bf16.xpose.msra.mxu0 0
        %1490 = vmatprep.subr.bf16.mxu0 0
        %1491 = vmatpush1.bf16.xpose.msra.mxu0 0
        %1492 = vmatprep.subr.bf16.mxu0 0
        %1493 = vmatpush1.bf16.xpose.msra.mxu0 0
        %1494 = vmatprep.subr.bf16.mxu0 0
        %1495 = vmatpush1.bf16.xpose.msra.mxu0 0
        %1496 = vmatprep.subr.bf16.mxu0 0
        %1497 = vmatpush1.bf16.xpose.msra.mxu0 0
        %1498 = vmatprep.subr.bf16.mxu0 0
        %1499 = vmatpush1.bf16.xpose.msra.mxu0 0
        %1500 = vmatprep.subr.bf16.mxu0 0
        %1501 = vmatpush1.bf16.xpose.msra.mxu0 0
        %1502 = vmatprep.subr.bf16.mxu0 0
        %1503 = vmatpush1.bf16.xpose.msra.mxu0 0
        %1504 = vmatprep.mubr.bf16.mxu0 0
        %1505 = vmatmul.mubr.bf16.gmra.mrb[0].mxu0 %v1467
        %v1506 = vpop.f32.mrb[0].mxu0
        %v1507 = vadd.f32 %v705, %v1506
        %v1508 = vpop.f32.mrb[0].mxu0
        %v1509 = vpop.f32.mrb[0].mxu0
        %v1510 = vpop.f32.mrb[0].mxu0
        %1511 = vdwg.mxu0
        %v1512 = vsel %vm713, %v1456, -inf
        %1513 = vmax.xlane.f32.xlu0 %v1512
        %v1514 = vpop.xlane.xlu0 %1513
        %v1515 = vsel %vm713, %v1507, -inf
        %1516 = vmax.xlane.f32.xlu0 %v1515
        %v1517 = vpop.xlane.xlu0 %1516
        %v1518 = vsub.f32 %v1456, %v1514
        %v1519 = vsub.f32 %v1507, %v1517
        %v1520 = vmul.f32 %v1518, 1.442695
        %v1521 = vpow.pop %v1520
        %v1522 = vmul.f32 %v1519, 1.442695
        %v1523 = vpow.pop %v1522
        %v1524 = vsel %vm713, %v1521, 0.0
        %1525 = vadd.xlane.f32.xlu0 %v1524
        %v1526 = vpop.xlane.xlu0 %1525
        %v1527 = vsel %vm713, %v1523, 0.0
        %1528 = vadd.xlane.f32.xlu0 %v1527
        %v1529 = vpop.xlane.xlu0 %1528
        %v1530 = vrcp.pop %v1526
        %v1531 = vrcp.pop %v1529
        %v1532 = vmul.f32 %v1521, %v1530
        %v1533 = vmul.f32 %v1523, %v1531
        %v1534 = vpack.c.bf16 %v1532, %v1532
        %v1535 = vpack.c.bf16 %v1533, %v1533
        %1536 = vrot.lane.b32.xlu0 %v1408, 40
        %v1537 = vpop.permute.xlu0 %1536
        %v1539 = vsel %vm713, %v1534, 0
        %v1542 = vsel %vm838, %v1537, 0
        %1544 = vmatprep.subr.bf16.mxu0 0
        %1545 = vmatpush1.bf16.msra.mxu0 %v1542
        %1546 = vmatprep.subr.bf16.mxu0 0
        %1547 = vmatpush1.bf16.msra.mxu0 0
        %1548 = vmatprep.subr.bf16.mxu0 0
        %1549 = vmatpush1.bf16.msra.mxu0 0
        %1550 = vmatprep.subr.bf16.mxu0 0
        %1551 = vmatpush1.bf16.msra.mxu0 0
        %1552 = vmatprep.subr.bf16.mxu0 0
        %1553 = vmatpush1.bf16.msra.mxu0 0
        %1554 = vmatprep.subr.bf16.mxu0 0
        %1555 = vmatpush1.bf16.msra.mxu0 0
        %1556 = vmatprep.subr.bf16.mxu0 0
        %1557 = vmatpush1.bf16.msra.mxu0 0
        %1558 = vmatprep.subr.bf16.mxu0 0
        %1559 = vmatpush1.bf16.msra.mxu0 0
        %1560 = vmatprep.subr.bf16.mxu0 0
        %1561 = vmatpush1.bf16.msra.mxu0 0
        %1562 = vmatprep.subr.bf16.mxu0 0
        %1563 = vmatpush1.bf16.msra.mxu0 0
        %1564 = vmatprep.subr.bf16.mxu0 0
        %1565 = vmatpush1.bf16.msra.mxu0 0
        %1566 = vmatprep.subr.bf16.mxu0 0
        %1567 = vmatpush1.bf16.msra.mxu0 0
        %1568 = vmatprep.subr.bf16.mxu0 0
        %1569 = vmatpush1.bf16.msra.mxu0 0
        %1570 = vmatprep.subr.bf16.mxu0 0
        %1571 = vmatpush1.bf16.msra.mxu0 0
        %1572 = vmatprep.subr.bf16.mxu0 0
        %1573 = vmatpush1.bf16.msra.mxu0 0
        %1574 = vmatprep.subr.bf16.mxu0 0
        %1575 = vmatpush1.bf16.msra.mxu0 0
        %1576 = vmatprep.mubr.bf16.mxu0 0
        %1577 = vmatmul.mubr.bf16.gmra.mrb[0].mxu0 %v1539
        %v1578 = vpop.f32.mrb[0].mxu0
        %v1579 = vadd.f32 0.0, %v1578
        %v1580 = vpop.f32.mrb[0].mxu0
        %v1581 = vpop.f32.mrb[0].mxu0
        %v1582 = vpop.f32.mrb[0].mxu0
        %1583 = vdwg.mxu0
        %1584 = vrot.lane.b32.xlu0 %v1409, 40
        %v1585 = vpop.permute.xlu0 %1584
        %v1587 = vsel %vm713, %v1535, 0
        %v1590 = vsel %vm838, %v1585, 0
        %1592 = vmatprep.subr.bf16.mxu0 0
        %1593 = vmatpush1.bf16.msra.mxu0 %v1590
        %1594 = vmatprep.subr.bf16.mxu0 0
        %1595 = vmatpush1.bf16.msra.mxu0 0
        %1596 = vmatprep.subr.bf16.mxu0 0
        %1597 = vmatpush1.bf16.msra.mxu0 0
        %1598 = vmatprep.subr.bf16.mxu0 0
        %1599 = vmatpush1.bf16.msra.mxu0 0
        %1600 = vmatprep.subr.bf16.mxu0 0
        %1601 = vmatpush1.bf16.msra.mxu0 0
        %1602 = vmatprep.subr.bf16.mxu0 0
        %1603 = vmatpush1.bf16.msra.mxu0 0
        %1604 = vmatprep.subr.bf16.mxu0 0
        %1605 = vmatpush1.bf16.msra.mxu0 0
        %1606 = vmatprep.subr.bf16.mxu0 0
        %1607 = vmatpush1.bf16.msra.mxu0 0
        %1608 = vmatprep.subr.bf16.mxu0 0
        %1609 = vmatpush1.bf16.msra.mxu0 0
        %1610 = vmatprep.subr.bf16.mxu0 0
        %1611 = vmatpush1.bf16.msra.mxu0 0
        %1612 = vmatprep.subr.bf16.mxu0 0
        %1613 = vmatpush1.bf16.msra.mxu0 0
        %1614 = vmatprep.subr.bf16.mxu0 0
        %1615 = vmatpush1.bf16.msra.mxu0 0
        %1616 = vmatprep.subr.bf16.mxu0 0
        %1617 = vmatpush1.bf16.msra.mxu0 0
        %1618 = vmatprep.subr.bf16.mxu0 0
        %1619 = vmatpush1.bf16.msra.mxu0 0
        %1620 = vmatprep.subr.bf16.mxu0 0
        %1621 = vmatpush1.bf16.msra.mxu0 0
        %1622 = vmatprep.subr.bf16.mxu0 0
        %1623 = vmatpush1.bf16.msra.mxu0 0
        %1624 = vmatprep.mubr.bf16.mxu0 0
        %1625 = vmatmul.mubr.bf16.gmra.mrb[0].mxu0 %v1587
        %v1626 = vpop.f32.mrb[0].mxu0
        %v1627 = vadd.f32 0.0, %v1626
        %v1628 = vpop.f32.mrb[0].mxu0
        %v1629 = vpop.f32.mrb[0].mxu0
        %v1630 = vpop.f32.mrb[0].mxu0
        %1631 = vdwg.mxu0
        %1634 = vrot.lane.b32.xlu0 %v1579, 24
        %v1635 = vpop.permute.xlu0 %1634
        %1636 = vrot.lane.b32.xlu0 %v1627, 24
        %v1637 = vpop.permute.xlu0 %1636
        %vm1640 = vcmask 261312
        %1641 = vst.msk [vmem:[#allocation3] sm:$0xff] %vm1640, %v1635
        %1642 = vst.msk [vmem:[#allocation3 + $0x8] sm:$0xff] %vm1640, %v1637
        %v1643 = vld [vmem:[#allocation3] sm:$0xff]
        %v1644 = vld [vmem:[#allocation3 + $0x8] sm:$0xff]
        %v1645 = vpack.c.bf16 %v1644, %v1643
        %v1646 = vld [vmem:[%s564] sm:$0xf]
        %v1647 = vld [vmem:[%s564 + $0x4] sm:$0xf]
        %v1648 = vld [vmem:[%s564 + $0x8] sm:$0xf]
        %v1649 = vld [vmem:[%s564 + $0xc] sm:$0xf]
        %v1654 = vunpack.c.l.b16 %v1646
        %v1655 = vunpack.c.l.b16 %v1647
        %v1656 = vunpack.c.l.b16 %v1648
        %v1657 = vunpack.c.l.b16 %v1649
        %v1658 = vpack.c.b16 %v1655, %v1654
        %v1659 = vpack.c.b16 %v1657, %v1656
        %v1663 = vsel %vm596, %v1645, 0
        %1665 = vmatprep.subr.bf16.mxu0 0
        %1666 = vmatpush1.bf16.msra.mxu0 %v1658
        %1667 = vmatprep.subr.bf16.mxu0 0
        %1668 = vmatpush1.bf16.msra.mxu0 %v1659
        %1669 = vmatprep.subr.bf16.mxu0 0
        %1670 = vmatpush1.bf16.msra.mxu0 0
        %1671 = vmatprep.subr.bf16.mxu0 0
        %1672 = vmatpush1.bf16.msra.mxu0 0
        %1673 = vmatprep.subr.bf16.mxu0 0
        %1674 = vmatpush1.bf16.msra.mxu0 0
        %1675 = vmatprep.subr.bf16.mxu0 0
        %1676 = vmatpush1.bf16.msra.mxu0 0
        %1677 = vmatprep.subr.bf16.mxu0 0
        %1678 = vmatpush1.bf16.msra.mxu0 0
        %1679 = vmatprep.subr.bf16.mxu0 0
        %1680 = vmatpush1.bf16.msra.mxu0 0
        %1681 = vmatprep.subr.bf16.mxu0 0
        %1682 = vmatpush1.bf16.msra.mxu0 0
        %1683 = vmatprep.subr.bf16.mxu0 0
        %1684 = vmatpush1.bf16.msra.mxu0 0
        %1685 = vmatprep.subr.bf16.mxu0 0
        %1686 = vmatpush1.bf16.msra.mxu0 0
        %1687 = vmatprep.subr.bf16.mxu0 0
        %1688 = vmatpush1.bf16.msra.mxu0 0
        %1689 = vmatprep.subr.bf16.mxu0 0
        %1690 = vmatpush1.bf16.msra.mxu0 0
        %1691 = vmatprep.subr.bf16.mxu0 0
        %1692 = vmatpush1.bf16.msra.mxu0 0
        %1693 = vmatprep.subr.bf16.mxu0 0
        %1694 = vmatpush1.bf16.msra.mxu0 0
        %1695 = vmatprep.subr.bf16.mxu0 0
        %1696 = vmatpush1.bf16.msra.mxu0 0
        %1697 = vmatprep.mubr.bf16.mxu0 0
        %1698 = vmatmul.mubr.bf16.gmra.mrb[0].mxu0 %v1663
        %v1699 = vpop.f32.mrb[0].mxu0
        %v1700 = vadd.f32 0.0, %v1699
        %v1701 = vpop.f32.mrb[0].mxu0
        %v1702 = vpop.f32.mrb[0].mxu0
        %v1703 = vadd.f32 0.0, %v1702
        %v1704 = vpop.f32.mrb[0].mxu0
        %1705 = vdwg.mxu0
        %v1706 = vadd.f32 %v592, %v1700
        %v1707 = vadd.f32 %v593, %v1703
        %v1708 = vpack.c.bf16 %v1707, %v1706
        %v1709 = vld [vmem:[%s569] sm:$0xf]
        %v1710 = vld [vmem:[%s569 + $0x4] sm:$0xf]
        %v1711 = vld [vmem:[%s569 + $0x8] sm:$0xf]
        %v1712 = vld [vmem:[%s569 + $0xc] sm:$0xf]
        %v1713 = vld [vmem:[%s572] sm:$0x1]
        %v1715 = vlaneseq
        %v1716 = vshrl.u32 %v1715, 7
        %v1717 = vsub.s32 0, %v1716
        %v1718 = vrot.slane %v1713, %v1717
        %v1724 = vunpack.c.l.b16 %v1709
        %v1725 = vunpack.c.l.b16 %v1710
        %v1726 = vunpack.c.l.b16 %v1711
        %v1727 = vunpack.c.l.b16 %v1712
        %v1728 = vpack.c.b16 %v1725, %v1724
        %v1729 = vpack.c.b16 %v1727, %v1726
        %v1733 = vsel %vm596, %v1708, 0
        %1735 = vmatprep.subr.bf16.mxu0 0
        %1736 = vmatpush1.bf16.msra.mxu0 %v1728
        %1737 = vmatprep.subr.bf16.mxu0 0
        %1738 = vmatpush1.bf16.msra.mxu0 %v1729
        %1739 = vmatprep.subr.bf16.mxu0 0
        %1740 = vmatpush1.bf16.msra.mxu0 0
        %1741 = vmatprep.subr.bf16.mxu0 0
        %1742 = vmatpush1.bf16.msra.mxu0 0
        %1743 = vmatprep.subr.bf16.mxu0 0
        %1744 = vmatpush1.bf16.msra.mxu0 0
        %1745 = vmatprep.subr.bf16.mxu0 0
        %1746 = vmatpush1.bf16.msra.mxu0 0
        %1747 = vmatprep.subr.bf16.mxu0 0
        %1748 = vmatpush1.bf16.msra.mxu0 0
        %1749 = vmatprep.subr.bf16.mxu0 0
        %1750 = vmatpush1.bf16.msra.mxu0 0
        %1751 = vmatprep.subr.bf16.mxu0 0
        %1752 = vmatpush1.bf16.msra.mxu0 0
        %1753 = vmatprep.subr.bf16.mxu0 0
        %1754 = vmatpush1.bf16.msra.mxu0 0
        %1755 = vmatprep.subr.bf16.mxu0 0
        %1756 = vmatpush1.bf16.msra.mxu0 0
        %1757 = vmatprep.subr.bf16.mxu0 0
        %1758 = vmatpush1.bf16.msra.mxu0 0
        %1759 = vmatprep.subr.bf16.mxu0 0
        %1760 = vmatpush1.bf16.msra.mxu0 0
        %1761 = vmatprep.subr.bf16.mxu0 0
        %1762 = vmatpush1.bf16.msra.mxu0 0
        %1763 = vmatprep.subr.bf16.mxu0 0
        %1764 = vmatpush1.bf16.msra.mxu0 0
        %1765 = vmatprep.subr.bf16.mxu0 0
        %1766 = vmatpush1.bf16.msra.mxu0 0
        %1767 = vmatprep.mubr.bf16.mxu0 0
        %1768 = vmatmul.mubr.bf16.gmra.mrb[0].mxu0 %v1733
        %v1769 = vpop.f32.mrb[0].mxu0
        %v1770 = vadd.f32 %v1718, %v1769
        %v1771 = vpop.f32.mrb[0].mxu0
        %v1772 = vpop.f32.mrb[0].mxu0
        %v1773 = vadd.f32 %v1718, %v1772
        %v1774 = vpop.f32.mrb[0].mxu0
        %1775 = vdwg.mxu0
        %v1776 = vmul.f32 %v1770, 0.5
        %v1777 = vmul.f32 %v1773, 0.5
        %v1778 = vmul.f32 %v1770, 0.70710677
        %v1779 = vmul.f32 %v1773, 0.70710677
        %v1780 = verf.f32.pop %v1778
        %v1781 = verf.f32.pop %v1779
        %v1782 = vadd.f32 %v1780, 1.0
        %v1783 = vadd.f32 %v1781, 1.0
        %v1784 = vmul.f32 %v1776, %v1782
        %v1785 = vmul.f32 %v1777, %v1783
        %v1786 = vpack.c.bf16 %v1785, %v1784
        %v1787 = vld [vmem:[%s577] sm:$0xf]
        %v1788 = vld [vmem:[%s577 + $0x4] sm:$0xf]
        %v1789 = vld [vmem:[%s577 + $0x8] sm:$0xf]
        %v1790 = vld [vmem:[%s577 + $0xc] sm:$0xf]
        %v1791 = vld [vmem:[%s577 + $0x10] sm:$0xf]
        %v1792 = vld [vmem:[%s577 + $0x14] sm:$0xf]
        %v1793 = vld [vmem:[%s577 + $0x18] sm:$0xf]
        %v1794 = vld [vmem:[%s577 + $0x1c] sm:$0xf]
        %v1795 = vld [vmem:[%s580] sm:$0x1]
        %v1797 = vlaneseq
        %v1798 = vshrl.u32 %v1797, 7
        %v1799 = vsub.s32 0, %v1798
        %v1800 = vrot.slane %v1795, %v1799
        %v1810 = vunpack.c.l.b16 %v1787
        %v1811 = vunpack.c.l.b16 %v1788
        %v1812 = vunpack.c.l.b16 %v1789
        %v1813 = vunpack.c.l.b16 %v1790
        %v1814 = vunpack.c.l.b16 %v1791
        %v1815 = vunpack.c.l.b16 %v1792
        %v1816 = vunpack.c.l.b16 %v1793
        %v1817 = vunpack.c.l.b16 %v1794
        %v1818 = vpack.c.b16 %v1811, %v1810
        %v1819 = vpack.c.b16 %v1813, %v1812
        %v1820 = vpack.c.b16 %v1815, %v1814
        %v1821 = vpack.c.b16 %v1817, %v1816
        %vm1826 = vcmask 523264
        %v1828 = vsel %vm1826, %v1786, 0
        %1830 = vmatprep.subr.bf16.mxu0 0
        %1831 = vmatpush1.bf16.msra.mxu0 %v1818
        %1832 = vmatprep.subr.bf16.mxu0 0
        %1833 = vmatpush1.bf16.msra.mxu0 %v1819
        %1834 = vmatprep.subr.bf16.mxu0 0
        %1835 = vmatpush1.bf16.msra.mxu0 %v1820
        %1836 = vmatprep.subr.bf16.mxu0 0
        %1837 = vmatpush1.bf16.msra.mxu0 %v1821
        %1838 = vmatprep.subr.bf16.mxu0 0
        %1839 = vmatpush1.bf16.msra.mxu0 0
        %1840 = vmatprep.subr.bf16.mxu0 0
        %1841 = vmatpush1.bf16.msra.mxu0 0
        %1842 = vmatprep.subr.bf16.mxu0 0
        %1843 = vmatpush1.bf16.msra.mxu0 0
        %1844 = vmatprep.subr.bf16.mxu0 0
        %1845 = vmatpush1.bf16.msra.mxu0 0
        %1846 = vmatprep.subr.bf16.mxu0 0
        %1847 = vmatpush1.bf16.msra.mxu0 0
        %1848 = vmatprep.subr.bf16.mxu0 0
        %1849 = vmatpush1.bf16.msra.mxu0 0
        %1850 = vmatprep.subr.bf16.mxu0 0
        %1851 = vmatpush1.bf16.msra.mxu0 0
        %1852 = vmatprep.subr.bf16.mxu0 0
        %1853 = vmatpush1.bf16.msra.mxu0 0
        %1854 = vmatprep.subr.bf16.mxu0 0
        %1855 = vmatpush1.bf16.msra.mxu0 0
        %1856 = vmatprep.subr.bf16.mxu0 0
        %1857 = vmatpush1.bf16.msra.mxu0 0
        %1858 = vmatprep.subr.bf16.mxu0 0
        %1859 = vmatpush1.bf16.msra.mxu0 0
        %1860 = vmatprep.subr.bf16.mxu0 0
        %1861 = vmatpush1.bf16.msra.mxu0 0
        %1862 = vmatprep.mubr.bf16.mxu0 0
        %1863 = vmatmul.mubr.bf16.gmra.mrb[0].mxu0 %v1828
        %v1864 = vpop.f32.mrb[0].mxu0
        %v1865 = vadd.f32 %v1800, %v1864
        %v1866 = vpop.f32.mrb[0].mxu0
        %v1867 = vpop.f32.mrb[0].mxu0
        %v1868 = vadd.f32 %v1800, %v1867
        %v1869 = vpop.f32.mrb[0].mxu0
        %1870 = vdwg.mxu0
        %v1871 = vadd.f32 %v1706, %v1865
        %v1872 = vadd.f32 %v1707, %v1868
        %p1873 = scmp.lt.s32.totalorder %s31, 1
        // Predicated region
        $region81: #{tpu_custom_call.1} parent=67 // pred_check
          %p1874 = pneg %p1873
        $region82: #{tpu_custom_call.1} parent=67 // pred_check_branch
          %1876 = sbr.rel (%p1874) target = $region84
        $region83: #{tpu_custom_call.1} parent=67 // pred_region
          %1877 = vst.msk [vmem:[#allocation9] sm:$0xff] %vm596, %v1871
          %1878 = vst.msk [vmem:[#allocation9 + $0x8] sm:$0xff] %vm596, %v1872
        $region84: #{tpu_custom_call.1} parent=67 // pred_fallthru
          _
        %p1879 = scmp.eq.s32.totalorder %s31, 1
        // Predicated region
        $region85: #{tpu_custom_call.1} parent=67 // pred_check
          %p1880 = pneg %p1879
        $region86: #{tpu_custom_call.1} parent=67 // pred_check_branch
          %1882 = sbr.rel (%p1880) target = $region88
        $region87: #{tpu_custom_call.1} parent=67 // pred_region
          %v1883 = vld [vmem:[%s10] sm:$0x1]
          %v1884 = vld [vmem:[%s11] sm:$0x1]
          %v1885 = vsel %vm596, %v1871, 0.0
          %1886 = vadd.xlane.f32.xlu0 %v1885
          %v1887 = vpop.xlane.xlu0 %1886
          %v1888 = vsel %vm596, %v1872, 0.0
          %1889 = vadd.xlane.f32.xlu0 %v1888
          %v1890 = vpop.xlane.xlu0 %1889
          %v1891 = vmul.f32 %v1887, %v603
          %v1892 = vmul.f32 %v1890, %v603
          %v1893 = vsub.f32 %v1871, %v1891
          %v1894 = vsub.f32 %v1872, %v1892
          %v1895 = vmul.f32 %v1893, %v1893
          %v1896 = vmul.f32 %v1894, %v1894
          %v1897 = vsel %vm596, %v1895, 0.0
          %1898 = vadd.xlane.f32.xlu0 %v1897
          %v1899 = vpop.xlane.xlu0 %1898
          %v1900 = vsel %vm596, %v1896, 0.0
          %1901 = vadd.xlane.f32.xlu0 %v1900
          %v1902 = vpop.xlane.xlu0 %1901
          %v1903 = vmul.f32 %v1899, %v603
          %v1904 = vmul.f32 %v1902, %v603
          %v1905 = vadd.f32 %v1903, 1e-05
          %v1906 = vadd.f32 %v1904, 1e-05
          %v1907 = vrsqrt.pop %v1905
          %v1908 = vrsqrt.pop %v1906
          %v1909 = vmul.f32 %v1893, %v1907
          %v1910 = vmul.f32 %v1894, %v1908
          %v1912 = vlaneseq
          %v1913 = vshrl.u32 %v1912, 7
          %v1914 = vsub.s32 0, %v1913
          %v1915 = vrot.slane %v1883, %v1914
          %v1917 = vmul.f32 %v1909, %v1915
          %v1918 = vmul.f32 %v1910, %v1915
          %v1920 = vlaneseq
          %v1921 = vshrl.u32 %v1920, 7
          %v1922 = vsub.s32 0, %v1921
          %v1923 = vrot.slane %v1884, %v1922
          %v1925 = vadd.f32 %v1917, %v1923
          %v1926 = vadd.f32 %v1918, %v1923
          %1927 = vst.msk [vmem:[#allocation9] sm:$0xff] %vm596, %v1925
          %1928 = vst.msk [vmem:[#allocation9 + $0x8] sm:$0xff] %vm596, %v1926
        $region88: #{tpu_custom_call.1} parent=67 // pred_fallthru
          _
        // Predicated region
        $region89: #{tpu_custom_call.1} parent=67 // pred_check
          %p1929 = pneg %p358
        $region90: #{tpu_custom_call.1} parent=67 // pred_check_branch
          %1931 = sbr.rel (%p1929) target = $region92
        $region91: #{tpu_custom_call.1} parent=67 // pred_region
          %s1932 = smul.u32 2, %s30
          %s1934 = ssub.s32 256, 256
          %1935 = vsyncadd [#allocation6], %s1934
          %s1936 = smul.addr %s1932, 128
          %s1937 = scalar_lea.hbm %s12, %s1936
          %s1938 = sshll.u32 [#allocation9], 4
          %s1939 = int_to_ptr.vmem [resolvable:$true] %s1938
          %1944 = dma.vmem_to_hbm [thread:$0]  %s1939, 256, %s1937, [#allocation6], 128, 128, 8
        $region92: #{tpu_custom_call.1} parent=67 // pred_fallthru
          _
        // Predicated region
        $region93: #{tpu_custom_call.1} parent=67 // pred_check
          %p1945 = pneg %p358
        $region94: #{tpu_custom_call.1} parent=67 // pred_check_branch
          %1947 = sbr.rel (%p1945) target = $region96
        $region95: #{tpu_custom_call.1} parent=67 // pred_region
          %1948 = dma.done [#allocation6], 256
        $region96: #{tpu_custom_call.1} parent=67 // pred_fallthru
          _
      $region68: #{tpu_custom_call.1} parent=5 // pred_fallthru
        _
      %p1949 = scmp.le.s32.totalorder 2, %s21
      // Predicated region
      $region97: #{tpu_custom_call.1} parent=5 // pred_check
        %p1950 = pneg %p1949
      $region98: #{tpu_custom_call.1} parent=5 // pred_check_branch
        %1952 = sbr.rel (%p1950) target = $region100
      $region99: #{tpu_custom_call.1} parent=5 // pred_region
        %s1953 = ssub.s32 %s21, 2
      $region100: #{tpu_custom_call.1} parent=5 // pred_fallthru
        _
    $region6: #{tpu_custom_call.1} parent=1 // loop_footer
      %s25 = sadd.s32 1, %s21
    $region7: #{tpu_custom_call.1} parent=1 // loop_footer_branch
      %20 = sbr.rel target = $region3
    $region8: #{tpu_custom_call.1} parent=1 // loop_exit
      _
    %1954 = vsyncpa [#allocation5], 1
    %s1955 = scalar_lea.sflag [#allocation5], 1
    %1956 = vsyncpa %s1955, 1
    %1957 = vsyncpa [#allocation8], 1
    %1958 = vsyncpa [#allocation6], 1
    %s1959 = scalar_lea.sflag [#allocation6], 1
    %1960 = vsyncpa %s1959, 1

</llo_original>
